<compile_context>
chip_gen: v5e
topology: v5e:2x2
jax: 0.10.0
libtpu: 0.0.40
codegen_flags: <defaults>
</compile_context>

<pallas_src>
import functools

import jax
import jax.numpy as jnp
from jax import lax
from jax.experimental import pallas as pl
from jax.experimental.pallas import tpu as pltpu

EPS = 1e-5          # nn.InstanceNorm3d default eps
NEG_SLOPE = 0.01    # nn.LeakyReLU default negative_slope


def _round_up(v, m):
    return -(-v // m) * m


def _plan(S, Cg, Cl, F_int):
    """Generation-aware tiling plan.

    Returns (Ts, S_pad, T, NC, fused_ok, vmem_limit):
      Ts        lane tile (multiple of 128)
      S_pad     padded spatial extent (= Ts * T)
      T         number of lane tiles per sample
      NC        core-split factor for pass 1 (2 when T > 1)
      fused_ok  whether the psi row fits in VMEM (fused pass 2+3)
      vmem_limit  scoped VMEM limit to request from the compiler
    """
    try:
        cap = int(getattr(pltpu.get_tpu_info(), "vmem_capacity_bytes", 64 << 20))
    except Exception:  # pragma: no cover - CPU tracing / older runtimes
        cap = 64 << 20
    vmem_limit = min(cap * 3 // 4, 100 << 20)   # headroom under physical VMEM
    budget = vmem_limit // 2                    # per-step working-set target

    S128 = _round_up(S, 128)
    # f32 bytes per lane of the fused pass working set: double-buffered g/x
    # inputs + double-buffered output + g1/x1/p/psi intermediates.
    per_lane = 4 * (2 * (Cg + Cl) + 2 * Cl + 3 * F_int + 2)
    ts_max = max(128, (budget // per_lane) // 128 * 128)

    if ts_max >= S128:
        Ts, T, NC = S128, 1, 1
    else:
        Ts = ts_max
        T = -(-S // Ts)
        if T % 2:
            T += 1              # even tile count so pass 1 splits over 2 cores
        NC = 2
    S_pad = Ts * T
    # psi VMEM scratch is a (1, S_pad) f32 row; budget it at 8 sublanes/lane
    # (conservative w.r.t. the (8,128) native tiling of a one-row array).
    fused_ok = 32 * S_pad + per_lane * Ts <= int(vmem_limit * 0.85)
    return Ts, S_pad, T, NC, fused_ok, vmem_limit


# ---------------------------------------------------------------------------
# Kernels
# ---------------------------------------------------------------------------
def _proj_stats_kernel(g_ref, x_ref, wg_ref, wx_ref, st_ref):
    """Pass 1: per-channel sum / sum-of-squares of g1 = Wg@g and x1 = Wx@x."""
    @pl.when(pl.program_id(2) == 0)
    def _init():
        st_ref[...] = jnp.zeros_like(st_ref)

    g1 = jnp.dot(wg_ref[...], g_ref[...], preferred_element_type=jnp.float32)
    x1 = jnp.dot(wx_ref[...], x_ref[...], preferred_element_type=jnp.float32)
    st_ref[...] += jnp.concatenate(
        [jnp.sum(g1, axis=1, keepdims=True),
         jnp.sum(g1 * g1, axis=1, keepdims=True),
         jnp.sum(x1, axis=1, keepdims=True),
         jnp.sum(x1 * x1, axis=1, keepdims=True)],
        axis=1)


def _psi_preact(g_ref, x_ref, wg_ref, wx_ref, wpsi_ref, st1_ref, inv_s):
    """InstanceNorm(Wg@g) + InstanceNorm(Wx@x) -> LeakyReLU -> psi conv."""
    g1 = jnp.dot(wg_ref[...], g_ref[...], preferred_element_type=jnp.float32)
    x1 = jnp.dot(wx_ref[...], x_ref[...], preferred_element_type=jnp.float32)
    st1 = st1_ref[...]                                     # (F_int, 4)
    mg = st1[:, 0:1] * inv_s
    vg = jnp.maximum(st1[:, 1:2] * inv_s - mg * mg, 0.0)   # clamp E[v^2]-m^2
    mx = st1[:, 2:3] * inv_s
    vx = jnp.maximum(st1[:, 3:4] * inv_s - mx * mx, 0.0)
    p = (g1 - mg) * lax.rsqrt(vg + EPS) + (x1 - mx) * lax.rsqrt(vx + EPS)
    p = jnp.where(p >= 0, p, NEG_SLOPE * p)                # LeakyReLU
    return jnp.dot(wpsi_ref[...], p, preferred_element_type=jnp.float32)


def _fused_psi_gate_kernel(g_ref, x_ref, wg_ref, wx_ref, wpsi_ref, st1_ref,
                           out_ref, psi_buf, psum_ref, psq_ref,
                           *, inv_s, ts, s_valid, need_mask):
    """Fused passes 2+3: phase 0 -> psi pre-act (VMEM) + stats, phase 1 -> gate."""
    phase = pl.program_id(1)
    t = pl.program_id(2)
    off = pl.multiple_of(t * ts, 128)

    @pl.when(jnp.logical_and(phase == 0, t == 0))
    def _init():
        psum_ref[...] = jnp.zeros_like(psum_ref)
        psq_ref[...] = jnp.zeros_like(psq_ref)

    @pl.when(phase == 0)
    def _phase_psi():
        psi = _psi_preact(g_ref, x_ref, wg_ref, wx_ref, wpsi_ref, st1_ref, inv_s)
        psi_buf[:, pl.ds(off, ts)] = psi                   # stays in VMEM
        if need_mask:
            lane = off + lax.broadcasted_iota(jnp.int32, psi.shape, 1)
            psi = jnp.where(lane < s_valid, psi, 0.0)
        psum_ref[...] += jnp.sum(psi, axis=1, keepdims=True)
        psq_ref[...] += jnp.sum(psi * psi, axis=1, keepdims=True)

    @pl.when(phase == 1)
    def _phase_gate():
        m = psum_ref[...] * inv_s                          # (1, 1)
        v = jnp.maximum(psq_ref[...] * inv_s - m * m, 0.0)
        psi = psi_buf[:, pl.ds(off, ts)]
        psi = jax.nn.sigmoid((psi - m) * lax.rsqrt(v + EPS))
        out_ref[...] = (x_ref[...] * psi).astype(out_ref.dtype)


def _psi_stream_kernel(g_ref, x_ref, wg_ref, wx_ref, wpsi_ref, st1_ref,
                       psi_ref, st2_ref, *, inv_s, ts, s_valid, need_mask):
    """Fallback pass 2 (huge S): stream psi pre-activation through HBM."""
    @pl.when(pl.program_id(1) == 0)
    def _init():
        st2_ref[...] = jnp.zeros_like(st2_ref)

    psi = _psi_preact(g_ref, x_ref, wg_ref, wx_ref, wpsi_ref, st1_ref, inv_s)
    psi_ref[...] = psi
    if need_mask:
        lane = pl.program_id(1) * ts + lax.broadcasted_iota(jnp.int32, psi.shape, 1)
        psi = jnp.where(lane < s_valid, psi, 0.0)
    st2_ref[...] += jnp.concatenate(
        [jnp.sum(psi, axis=1, keepdims=True),
         jnp.sum(psi * psi, axis=1, keepdims=True)],
        axis=1)


def _gate_kernel(x_ref, psi_ref, st2_ref, out_ref, *, inv_s):
    """Fallback pass 3: InstanceNorm(psi) + sigmoid, gate the skip connection."""
    st2 = st2_ref[...]                                     # (1, 2)
    m = st2[:, 0:1] * inv_s
    v = jnp.maximum(st2[:, 1:2] * inv_s - m * m, 0.0)
    psi = jax.nn.sigmoid((psi_ref[...] - m) * lax.rsqrt(v + EPS))
    out_ref[...] = (x_ref[...] * psi).astype(out_ref.dtype)


# ---------------------------------------------------------------------------
# Wrapper
# ---------------------------------------------------------------------------
def attention_block(g, x, params):
    """g: (N, F_g, D, H, W), x: (N, F_l, D, H, W) -> (N, F_l, D, H, W)."""
    wg, bg, wx, bx, wpsi, bpsi = params
    # Every conv feeds InstanceNorm3d(affine=False), which subtracts the
    # per-channel mean -> constant per-channel conv biases cancel exactly.
    # (Revisit if the module ever switches to affine / different norms.)
    del bg, bx, bpsi

    N, Cg, D, H, W = g.shape
    _, Cl, _, _, _ = x.shape
    F_int = wg.shape[0]
    S = D * H * W
    inv_s = 1.0 / S
    itemsize = jnp.dtype(x.dtype).itemsize

    Ts, S_pad, T, NC, fused_ok, vmem_limit = _plan(S, Cg, Cl, F_int)
    T_half = T // NC
    need_mask = S_pad != S

    # Channel-major, S on lanes; no HBM transpose.  Zero-pad S to the tile.
    # TODO(synk): optionally cast g2/x2 (and streamed psi) to bfloat16 to halve
    # HBM traffic on this bandwidth-bound kernel, if model numerics allow.
    g2 = g.reshape(N, Cg, S)
    x2 = x.reshape(N, Cl, S)
    if need_mask:
        g2 = jnp.pad(g2, ((0, 0), (0, 0), (0, S_pad - S)))
        x2 = jnp.pad(x2, ((0, 0), (0, 0), (0, S_pad - S)))

    wg = wg.astype(jnp.float32)
    wx = wx.astype(jnp.float32)
    wpsi = wpsi.astype(jnp.float32).reshape(1, F_int)

    def cparams(sem):
        return pltpu.CompilerParams(dimension_semantics=sem,
                                    vmem_limit_bytes=vmem_limit)

    # --- pass 1: per-channel sum / sumsq of the two projections -------------
    # The NC ("parallel") axis splits the S range over both TensorCores even
    # when N == 1; per-core partial stats are summed in the wrapper.
    stats_part = pl.pallas_call(
        _proj_stats_kernel,
        out_shape=jax.ShapeDtypeStruct((N * NC, F_int, 4), jnp.float32),
        grid_spec=pltpu.PrefetchScalarGridSpec(
            num_scalar_prefetch=0,
            grid=(N, NC, T_half),
            in_specs=[
                pl.BlockSpec((None, Cg, Ts), lambda n, c, t: (n, 0, c * T_half + t)),
                pl.BlockSpec((None, Cl, Ts), lambda n, c, t: (n, 0, c * T_half + t)),
                pl.BlockSpec((F_int, Cg), lambda n, c, t: (0, 0)),
                pl.BlockSpec((F_int, Cl), lambda n, c, t: (0, 0)),
            ],
            out_specs=pl.BlockSpec((None, F_int, 4),
                                   lambda n, c, t: (n * NC + c, 0, 0)),
        ),
        compiler_params=cparams(("parallel", "parallel", "arbitrary")),
        cost_estimate=pl.CostEstimate(
            flops=2 * N * S_pad * F_int * (Cg + Cl) + 4 * N * S_pad * F_int,
            transcendentals=0,
            bytes_accessed=4 * N * S_pad * (Cg + Cl) + 16 * N * NC * F_int),
    )(g2, x2, wg, wx)
    stats1 = stats_part.reshape(N, NC, F_int, 4).sum(axis=1)   # (N, F_int, 4)

    if fused_ok:
        # --- fused passes 2+3: psi row resident in VMEM ----------------------
        # TODO(synk): core-split the fused pass along S for N == 1 on v7x
        # (needs a cross-core psi-stats exchange); the N axis is parallel.
        out = pl.pallas_call(
            functools.partial(_fused_psi_gate_kernel, inv_s=inv_s, ts=Ts,
                              s_valid=S, need_mask=need_mask),
            out_shape=jax.ShapeDtypeStruct((N, Cl, S_pad), x.dtype),
            grid_spec=pltpu.PrefetchScalarGridSpec(
                num_scalar_prefetch=0,
                grid=(N, 2, T),
                in_specs=[
                    # g is only used in phase 0 -> pin its block during phase 1
                    pl.BlockSpec((None, Cg, Ts), lambda n, p, t: (n, 0, t * (1 - p))),
                    pl.BlockSpec((None, Cl, Ts), lambda n, p, t: (n, 0, t)),
                    pl.BlockSpec((F_int, Cg), lambda n, p, t: (0, 0)),
                    pl.BlockSpec((F_int, Cl), lambda n, p, t: (0, 0)),
                    pl.BlockSpec((1, F_int), lambda n, p, t: (0, 0)),
                    pl.BlockSpec((None, F_int, 4), lambda n, p, t: (n, 0, 0)),
                ],
                # output only written in phase 1 -> keep it resident (index 0)
                # during phase 0 so no garbage writebacks happen.
                out_specs=pl.BlockSpec((None, Cl, Ts), lambda n, p, t: (n, 0, t * p)),
                scratch_shapes=[
                    pltpu.VMEM((1, S_pad), jnp.float32),   # psi pre-activation
                    pltpu.VMEM((1, 1), jnp.float32),       # sum(psi)
                    pltpu.VMEM((1, 1), jnp.float32),       # sum(psi^2)
                ],
            ),
            compiler_params=cparams(("parallel", "arbitrary", "arbitrary")),
            cost_estimate=pl.CostEstimate(
                flops=2 * N * S_pad * F_int * (Cg + Cl + 1) + 12 * N * S_pad * F_int,
                transcendentals=2 * N * S_pad,
                bytes_accessed=itemsize * N * S_pad * (Cg + 3 * Cl)),
        )(g2, x2, wg, wx, wpsi, stats1)
    else:
        # --- fallback 3-pass path for huge volumes (psi row won't fit VMEM) --
        psi_pre, stats2 = pl.pallas_call(
            functools.partial(_psi_stream_kernel, inv_s=inv_s, ts=Ts,
                              s_valid=S, need_mask=need_mask),
            out_shape=(jax.ShapeDtypeStruct((N, 1, S_pad), jnp.float32),
                       jax.ShapeDtypeStruct((N, 1, 2), jnp.float32)),
            grid_spec=pltpu.PrefetchScalarGridSpec(
                num_scalar_prefetch=0,
                grid=(N, T),
                in_specs=[
                    pl.BlockSpec((None, Cg, Ts), lambda n, t: (n, 0, t)),
                    pl.BlockSpec((None, Cl, Ts), lambda n, t: (n, 0, t)),
                    pl.BlockSpec((F_int, Cg), lambda n, t: (0, 0)),
                    pl.BlockSpec((F_int, Cl), lambda n, t: (0, 0)),
                    pl.BlockSpec((1, F_int), lambda n, t: (0, 0)),
                    pl.BlockSpec((None, F_int, 4), lambda n, t: (n, 0, 0)),
                ],
                out_specs=[
                    pl.BlockSpec((None, 1, Ts), lambda n, t: (n, 0, t)),
                    pl.BlockSpec((None, 1, 2), lambda n, t: (n, 0, 0)),
                ],
            ),
            compiler_params=cparams(("parallel", "arbitrary")),
        )(g2, x2, wg, wx, wpsi, stats1)

        out = pl.pallas_call(
            functools.partial(_gate_kernel, inv_s=inv_s),
            out_shape=jax.ShapeDtypeStruct((N, Cl, S_pad), x.dtype),
            grid_spec=pltpu.PrefetchScalarGridSpec(
                num_scalar_prefetch=0,
                grid=(N, T),
                in_specs=[
                    pl.BlockSpec((None, Cl, Ts), lambda n, t: (n, 0, t)),
                    pl.BlockSpec((None, 1, Ts), lambda n, t: (n, 0, t)),
                    pl.BlockSpec((None, 1, 2), lambda n, t: (n, 0, 0)),
                ],
                out_specs=pl.BlockSpec((None, Cl, Ts), lambda n, t: (n, 0, t)),
            ),
            compiler_params=cparams(("parallel", "parallel")),
        )(x2, psi_pre, stats2)

    if need_mask:
        out = out[:, :, :S]
    return out.reshape(N, Cl, D, H, W)


# ---------------------------------------------------------------------------
# Pure-JAX reference (matches the PyTorch module semantics, NCDHW)
# ---------------------------------------------------------------------------
def reference(g, x, params):
    wg, bg, wx, bx, wpsi, bpsi = params

    def conv1(v, w, b):
        return jnp.einsum('ncdhw,oc->nodhw', v, w) + b[None, :, None, None, None]

    def inorm(v):
        mean = v.mean(axis=(2, 3, 4), keepdims=True)
        var = ((v - mean) ** 2).mean(axis=(2, 3, 4), keepdims=True)
        return (v - mean) / jnp.sqrt(var + EPS)

    g1 = inorm(conv1(g, wg, bg))
    x1 = inorm(conv1(x, wx, bx))
    p = g1 + x1
    p = jnp.where(p >= 0, p, NEG_SLOPE * p)
    psi = jax.nn.sigmoid(inorm(conv1(p, wpsi, bpsi)))
    return x * psi


if __name__ == "__main__":
    N, F_g, F_l, F_int = 2, 4, 4, 8
    D = H = W = 4

    key = jax.random.PRNGKey(0)
    keys = jax.random.split(key, 8)
    g = jax.random.normal(keys[0], (N, F_g, D, H, W), jnp.float32)
    x = jax.random.normal(keys[1], (N, F_l, D, H, W), jnp.float32)

    # Conv3d kernel_size=1 -> weights are (Cout, Cin).
    wg = 0.1 * jax.random.normal(keys[2], (F_int, F_g), jnp.float32)
    bg = 0.1 * jax.random.normal(keys[3], (F_int,), jnp.float32)
    wx = 0.1 * jax.random.normal(keys[4], (F_int, F_l), jnp.float32)
    bx = 0.1 * jax.random.normal(keys[5], (F_int,), jnp.float32)
    wpsi = 0.1 * jax.random.normal(keys[6], (1, F_int), jnp.float32)
    bpsi = 0.1 * jax.random.normal(keys[7], (1,), jnp.float32)
    params = (wg, bg, wx, bx, wpsi, bpsi)

    attn = jax.jit(attention_block)
    out = attn(g, x, params)
    out = jax.block_until_ready(out)

    ref = reference(g, x, params)
    assert out.shape == x.shape
    assert jnp.allclose(out, ref, atol=1e-4, rtol=1e-4), "mismatch vs reference"

    print("KERNEL_OK")
</pallas_src>

<mosaic_0001>
module attributes {stable_mosaic.version = 11 : i64} {
  func.func @_proj_stats_kernel(%arg0: i32, %arg1: i32, %arg2: i32, %arg3: memref<1x4x128xf32, #tpu.memory_space<vmem>>, %arg4: memref<1x4x128xf32, #tpu.memory_space<vmem>>, %arg5: memref<8x4xf32, #tpu.memory_space<vmem>>, %arg6: memref<8x4xf32, #tpu.memory_space<vmem>>, %arg7: memref<1x8x4xf32, #tpu.memory_space<vmem>>) attributes {dimension_semantics = [#tpu.dimension_semantics<parallel>, #tpu.dimension_semantics<parallel>, #tpu.dimension_semantics<arbitrary>], iteration_bounds = array<i64: 2, 1, 1>, scalar_prefetch = 0 : i64, scratch_operands = 0 : i64, tpu.core_type = #tpu.core_type<tc>, window_params = [{transform_indices = @transform_0, window_bounds = array<i64: 1, 4, 128>}, {transform_indices = @transform_1, window_bounds = array<i64: 1, 4, 128>}, {pipeline_mode = #tpu.pipeline_mode<synchronous>, transform_indices = @transform_2, window_bounds = array<i64: 8, 4>}, {pipeline_mode = #tpu.pipeline_mode<synchronous>, transform_indices = @transform_3, window_bounds = array<i64: 8, 4>}, {transform_indices = @transform_4, window_bounds = array<i64: 1, 8, 4>}]} {
    %c0_i32 = arith.constant 0 : i32
    %0 = arith.cmpi eq, %arg2, %c0_i32 : i32
    %1 = arith.extui %0 : i1 to i32
    %c0_i32_0 = arith.constant 0 : i32
    %2 = arith.cmpi ne, %1, %c0_i32_0 : i32
    scf.if %2 {
      %cst_21 = arith.constant 0.000000e+00 : f32
      %28 = vector.broadcast %cst_21 : f32 to vector<8x4xf32>
      %c0_22 = arith.constant 0 : index
      %c0_23 = arith.constant 0 : index
      %c0_24 = arith.constant 0 : index
      %29 = vector.load %arg7[%c0_22, %c0_23, %c0_24] : memref<1x8x4xf32, #tpu.memory_space<vmem>>, vector<1x8x4xf32>
      %30 = vector.shape_cast %29 : vector<1x8x4xf32> to vector<8x4xf32>
      %31 = vector.shape_cast %28 : vector<8x4xf32> to vector<1x8x4xf32>
      tpu.vector_store %arg7[%c0_22, %c0_23, %c0_24], %31 {strides = array<i32>} : memref<1x8x4xf32, #tpu.memory_space<vmem>>, vector<1x8x4xf32>,
    } else {
    }
    %c0 = arith.constant 0 : index
    %c0_1 = arith.constant 0 : index
    %3 = vector.load %arg5[%c0, %c0_1] : memref<8x4xf32, #tpu.memory_space<vmem>>, vector<8x4xf32>
    %c0_2 = arith.constant 0 : index
    %c0_3 = arith.constant 0 : index
    %c0_4 = arith.constant 0 : index
    %4 = vector.load %arg3[%c0_2, %c0_3, %c0_4] : memref<1x4x128xf32, #tpu.memory_space<vmem>>, vector<1x4x128xf32>
    %5 = vector.shape_cast %4 : vector<1x4x128xf32> to vector<4x128xf32>
    %cst = arith.constant dense<0.000000e+00> : vector<8x128xf32>
    %6 = tpu.matmul %3, %5, %cst {dimension_numbers = #tpu.dot_dimension_numbers<[1], [0], [0], [1], [0, 0, 1, 1], [], []>} : vector<8x4xf32>, vector<4x128xf32>, vector<8x128xf32> -> vector<8x128xf32>
    %c0_5 = arith.constant 0 : index
    %c0_6 = arith.constant 0 : index
    %7 = vector.load %arg6[%c0_5, %c0_6] : memref<8x4xf32, #tpu.memory_space<vmem>>, vector<8x4xf32>
    %c0_7 = arith.constant 0 : index
    %c0_8 = arith.constant 0 : index
    %c0_9 = arith.constant 0 : index
    %8 = vector.load %arg4[%c0_7, %c0_8, %c0_9] : memref<1x4x128xf32, #tpu.memory_space<vmem>>, vector<1x4x128xf32>
    %9 = vector.shape_cast %8 : vector<1x4x128xf32> to vector<4x128xf32>
    %cst_10 = arith.constant dense<0.000000e+00> : vector<8x128xf32>
    %10 = tpu.matmul %7, %9, %cst_10 {dimension_numbers = #tpu.dot_dimension_numbers<[1], [0], [0], [1], [0, 0, 1, 1], [], []>} : vector<8x4xf32>, vector<4x128xf32>, vector<8x128xf32> -> vector<8x128xf32>
    %c0_11 = arith.constant 0 : index
    %c0_12 = arith.constant 0 : index
    %c0_13 = arith.constant 0 : index
    %11 = vector.load %arg7[%c0_11, %c0_12, %c0_13] : memref<1x8x4xf32, #tpu.memory_space<vmem>>, vector<1x8x4xf32>
    %12 = vector.shape_cast %11 : vector<1x8x4xf32> to vector<8x4xf32>
    %cst_14 = arith.constant dense<0.000000e+00> : vector<8xf32>
    %13 = vector.multi_reduction <add>, %6, %cst_14 [1] : vector<8x128xf32> to vector<8xf32>
    %14 = vector.shape_cast %13 : vector<8xf32> to vector<8x1xf32>
    %15 = arith.mulf %6, %6 : vector<8x128xf32>
    %cst_15 = arith.constant dense<0.000000e+00> : vector<8xf32>
    %16 = vector.multi_reduction <add>, %15, %cst_15 [1] : vector<8x128xf32> to vector<8xf32>
    %17 = vector.shape_cast %16 : vector<8xf32> to vector<8x1xf32>
    %cst_16 = arith.constant dense<0.000000e+00> : vector<8xf32>
    %18 = vector.multi_reduction <add>, %10, %cst_16 [1] : vector<8x128xf32> to vector<8xf32>
    %19 = vector.shape_cast %18 : vector<8xf32> to vector<8x1xf32>
    %20 = arith.mulf %10, %10 : vector<8x128xf32>
    %cst_17 = arith.constant dense<0.000000e+00> : vector<8xf32>
    %21 = vector.multi_reduction <add>, %20, %cst_17 [1] : vector<8x128xf32> to vector<8xf32>
    %22 = vector.shape_cast %21 : vector<8xf32> to vector<8x1xf32>
    %23 = tpu.concatenate %14, %17, %19, %22 in 1 : vector<8x1xf32>, vector<8x1xf32>, vector<8x1xf32>, vector<8x1xf32> -> vector<8x4xf32>
    %24 = arith.addf %12, %23 : vector<8x4xf32>
    %c0_18 = arith.constant 0 : index
    %c0_19 = arith.constant 0 : index
    %c0_20 = arith.constant 0 : index
    %25 = vector.load %arg7[%c0_18, %c0_19, %c0_20] : memref<1x8x4xf32, #tpu.memory_space<vmem>>, vector<1x8x4xf32>
    %26 = vector.shape_cast %25 : vector<1x8x4xf32> to vector<8x4xf32>
    %27 = vector.shape_cast %24 : vector<8x4xf32> to vector<1x8x4xf32>
    tpu.vector_store %arg7[%c0_18, %c0_19, %c0_20], %27 {strides = array<i32>} : memref<1x8x4xf32, #tpu.memory_space<vmem>>, vector<1x8x4xf32>,
    return
  }
  func.func @transform_0(%arg0: i32, %arg1: i32, %arg2: i32) -> (i32, i32, i32) {
    %c1_i32 = arith.constant 1 : i32
    %0 = arith.muli %arg1, %c1_i32 : i32
    %1 = arith.addi %0, %arg2 : i32
    %c0_i32 = arith.constant 0 : i32
    %c0_i32_0 = arith.constant 0 : i32
    return %arg0, %c0_i32, %1 : i32, i32, i32
  }
  func.func @transform_1(%arg0: i32, %arg1: i32, %arg2: i32) -> (i32, i32, i32) {
    %c1_i32 = arith.constant 1 : i32
    %0 = arith.muli %arg1, %c1_i32 : i32
    %1 = arith.addi %0, %arg2 : i32
    %c0_i32 = arith.constant 0 : i32
    %c0_i32_0 = arith.constant 0 : i32
    return %arg0, %c0_i32, %1 : i32, i32, i32
  }
  func.func @transform_2(%arg0: i32, %arg1: i32, %arg2: i32) -> (i32, i32) {
    %c0_i32 = arith.constant 0 : i32
    %c0_i32_0 = arith.constant 0 : i32
    %c0_i32_1 = arith.constant 0 : i32
    return %c0_i32, %c0_i32_0 : i32, i32
  }
  func.func @transform_3(%arg0: i32, %arg1: i32, %arg2: i32) -> (i32, i32) {
    %c0_i32 = arith.constant 0 : i32
    %c0_i32_0 = arith.constant 0 : i32
    %c0_i32_1 = arith.constant 0 : i32
    return %c0_i32, %c0_i32_0 : i32, i32
  }
  func.func @transform_4(%arg0: i32, %arg1: i32, %arg2: i32) -> (i32, i32, i32) {
    %c1_i32 = arith.constant 1 : i32
    %0 = arith.muli %arg0, %c1_i32 : i32
    %1 = arith.addi %0, %arg1 : i32
    %c0_i32 = arith.constant 0 : i32
    %c0_i32_0 = arith.constant 0 : i32
    %c0_i32_1 = arith.constant 0 : i32
    return %1, %c0_i32, %c0_i32_0 : i32, i32, i32
  }
}

module attributes {stable_mosaic.version = 11 : i64} {
  func.func @_fused_psi_gate_kernel(%arg0: i32, %arg1: i32, %arg2: i32, %arg3: memref<1x4x128xf32, #tpu.memory_space<vmem>>, %arg4: memref<1x4x128xf32, #tpu.memory_space<vmem>>, %arg5: memref<8x4xf32, #tpu.memory_space<vmem>>, %arg6: memref<8x4xf32, #tpu.memory_space<vmem>>, %arg7: memref<1x8xf32, #tpu.memory_space<vmem>>, %arg8: memref<1x8x4xf32, #tpu.memory_space<vmem>>, %arg9: memref<1x4x128xf32, #tpu.memory_space<vmem>>, %arg10: memref<1x128xf32, #tpu.memory_space<vmem>>, %arg11: memref<1x1xf32, #tpu.memory_space<vmem>>, %arg12: memref<1x1xf32, #tpu.memory_space<vmem>>) attributes {dimension_semantics = [#tpu.dimension_semantics<parallel>, #tpu.dimension_semantics<arbitrary>, #tpu.dimension_semantics<arbitrary>], iteration_bounds = array<i64: 2, 2, 1>, scalar_prefetch = 0 : i64, scratch_operands = 3 : i64, tpu.core_type = #tpu.core_type<tc>, window_params = [{transform_indices = @transform_0, window_bounds = array<i64: 1, 4, 128>}, {transform_indices = @transform_1, window_bounds = array<i64: 1, 4, 128>}, {pipeline_mode = #tpu.pipeline_mode<synchronous>, transform_indices = @transform_2, window_bounds = array<i64: 8, 4>}, {pipeline_mode = #tpu.pipeline_mode<synchronous>, transform_indices = @transform_3, window_bounds = array<i64: 8, 4>}, {pipeline_mode = #tpu.pipeline_mode<synchronous>, transform_indices = @transform_4, window_bounds = array<i64: 1, 8>}, {transform_indices = @transform_5, window_bounds = array<i64: 1, 8, 4>}, {transform_indices = @transform_6, window_bounds = array<i64: 1, 4, 128>}]} {
    %c128_i32 = arith.constant 128 : i32
    %0 = arith.muli %arg2, %c128_i32 : i32
    %1 = tpu.assume_multiple %0, 128 : i32
    %c0_i32 = arith.constant 0 : i32
    %2 = arith.cmpi eq, %arg1, %c0_i32 : i32
    %c0_i32_0 = arith.constant 0 : i32
    %3 = arith.cmpi eq, %arg2, %c0_i32_0 : i32
    %4 = arith.andi %2, %3 : i1
    %5 = arith.extui %4 : i1 to i32
    %c0_i32_1 = arith.constant 0 : i32
    %6 = arith.cmpi ne, %5, %c0_i32_1 : i32
    scf.if %6 {
      %cst = arith.constant 0.000000e+00 : f32
      %13 = vector.broadcast %cst : f32 to vector<1x1xf32>
      %c0 = arith.constant 0 : index
      %c0_5 = arith.constant 0 : index
      %14 = vector.load %arg11[%c0, %c0_5] : memref<1x1xf32, #tpu.memory_space<vmem>>, vector<1x1xf32>
      tpu.vector_store %arg11[%c0, %c0_5], %13 {strides = array<i32>} : memref<1x1xf32, #tpu.memory_space<vmem>>, vector<1x1xf32>,
      %cst_6 = arith.constant 0.000000e+00 : f32
      %15 = vector.broadcast %cst_6 : f32 to vector<1x1xf32>
      %c0_7 = arith.constant 0 : index
      %c0_8 = arith.constant 0 : index
      %16 = vector.load %arg12[%c0_7, %c0_8] : memref<1x1xf32, #tpu.memory_space<vmem>>, vector<1x1xf32>
      tpu.vector_store %arg12[%c0_7, %c0_8], %15 {strides = array<i32>} : memref<1x1xf32, #tpu.memory_space<vmem>>, vector<1x1xf32>,
    } else {
    }
    %c0_i32_2 = arith.constant 0 : i32
    %7 = arith.cmpi eq, %arg1, %c0_i32_2 : i32
    %8 = arith.extui %7 : i1 to i32
    %c0_i32_3 = arith.constant 0 : i32
    %9 = arith.cmpi ne, %8, %c0_i32_3 : i32
    scf.if %9 {
      %c0 = arith.constant 0 : index
      %c0_5 = arith.constant 0 : index
      %13 = vector.load %arg5[%c0, %c0_5] : memref<8x4xf32, #tpu.memory_space<vmem>>, vector<8x4xf32>
      %c0_6 = arith.constant 0 : index
      %c0_7 = arith.constant 0 : index
      %c0_8 = arith.constant 0 : index
      %14 = vector.load %arg3[%c0_6, %c0_7, %c0_8] : memref<1x4x128xf32, #tpu.memory_space<vmem>>, vector<1x4x128xf32>
      %15 = vector.shape_cast %14 : vector<1x4x128xf32> to vector<4x128xf32>
      %cst = arith.constant dense<0.000000e+00> : vector<8x128xf32>
      %16 = tpu.matmul %13, %15, %cst {dimension_numbers = #tpu.dot_dimension_numbers<[1], [0], [0], [1], [0, 0, 1, 1], [], []>} : vector<8x4xf32>, vector<4x128xf32>, vector<8x128xf32> -> vector<8x128xf32>
      %c0_9 = arith.constant 0 : index
      %c0_10 = arith.constant 0 : index
      %17 = vector.load %arg6[%c0_9, %c0_10] : memref<8x4xf32, #tpu.memory_space<vmem>>, vector<8x4xf32>
      %c0_11 = arith.constant 0 : index
      %c0_12 = arith.constant 0 : index
      %c0_13 = arith.constant 0 : index
      %18 = vector.load %arg4[%c0_11, %c0_12, %c0_13] : memref<1x4x128xf32, #tpu.memory_space<vmem>>, vector<1x4x128xf32>
      %19 = vector.shape_cast %18 : vector<1x4x128xf32> to vector<4x128xf32>
      %cst_14 = arith.constant dense<0.000000e+00> : vector<8x128xf32>
      %20 = tpu.matmul %17, %19, %cst_14 {dimension_numbers = #tpu.dot_dimension_numbers<[1], [0], [0], [1], [0, 0, 1, 1], [], []>} : vector<8x4xf32>, vector<4x128xf32>, vector<8x128xf32> -> vector<8x128xf32>
      %c0_15 = arith.constant 0 : index
      %c0_16 = arith.constant 0 : index
      %c0_17 = arith.constant 0 : index
      %21 = vector.load %arg8[%c0_15, %c0_16, %c0_17] : memref<1x8x4xf32, #tpu.memory_space<vmem>>, vector<1x8x4xf32>
      %22 = vector.shape_cast %21 : vector<1x8x4xf32> to vector<8x4xf32>
      %23 = vector.extract_strided_slice %22 {offsets = [0, 0], sizes = [8, 1], strides = [1, 1]} : vector<8x4xf32> to vector<8x1xf32>
      %cst_18 = arith.constant 1.562500e-02 : f32
      %24 = vector.broadcast %cst_18 : f32 to vector<8x1xf32>
      %25 = arith.mulf %23, %24 : vector<8x1xf32>
      %26 = vector.extract_strided_slice %22 {offsets = [0, 1], sizes = [8, 1], strides = [1, 1]} : vector<8x4xf32> to vector<8x1xf32>
      %cst_19 = arith.constant 1.562500e-02 : f32
      %27 = vector.broadcast %cst_19 : f32 to vector<8x1xf32>
      %28 = arith.mulf %26, %27 : vector<8x1xf32>
      %29 = arith.mulf %25, %25 : vector<8x1xf32>
      %30 = arith.subf %28, %29 : vector<8x1xf32>
      %cst_20 = arith.constant 0.000000e+00 : f32
      %31 = vector.broadcast %cst_20 : f32 to vector<8x1xf32>
      %32 = arith.maximumf %30, %31 : vector<8x1xf32>
      %33 = vector.extract_strided_slice %22 {offsets = [0, 2], sizes = [8, 1], strides = [1, 1]} : vector<8x4xf32> to vector<8x1xf32>
      %cst_21 = arith.constant 1.562500e-02 : f32
      %34 = vector.broadcast %cst_21 : f32 to vector<8x1xf32>
      %35 = arith.mulf %33, %34 : vector<8x1xf32>
      %36 = vector.extract_strided_slice %22 {offsets = [0, 3], sizes = [8, 1], strides = [1, 1]} : vector<8x4xf32> to vector<8x1xf32>
      %cst_22 = arith.constant 1.562500e-02 : f32
      %37 = vector.broadcast %cst_22 : f32 to vector<8x1xf32>
      %38 = arith.mulf %36, %37 : vector<8x1xf32>
      %39 = arith.mulf %35, %35 : vector<8x1xf32>
      %40 = arith.subf %38, %39 : vector<8x1xf32>
      %cst_23 = arith.constant 0.000000e+00 : f32
      %41 = vector.broadcast %cst_23 : f32 to vector<8x1xf32>
      %42 = arith.maximumf %40, %41 : vector<8x1xf32>
      %43 = vector.broadcast %25 : vector<8x1xf32> to vector<8x128xf32>
      %44 = arith.subf %16, %43 : vector<8x128xf32>
      %cst_24 = arith.constant 9.99999974E-6 : f32
      %45 = vector.broadcast %cst_24 : f32 to vector<8x1xf32>
      %46 = arith.addf %32, %45 : vector<8x1xf32>
      %47 = math.rsqrt %46 : vector<8x1xf32>
      %48 = vector.broadcast %47 : vector<8x1xf32> to vector<8x128xf32>
      %49 = arith.mulf %44, %48 : vector<8x128xf32>
      %50 = vector.broadcast %35 : vector<8x1xf32> to vector<8x128xf32>
      %51 = arith.subf %20, %50 : vector<8x128xf32>
      %cst_25 = arith.constant 9.99999974E-6 : f32
      %52 = vector.broadcast %cst_25 : f32 to vector<8x1xf32>
      %53 = arith.addf %42, %52 : vector<8x1xf32>
      %54 = math.rsqrt %53 : vector<8x1xf32>
      %55 = vector.broadcast %54 : vector<8x1xf32> to vector<8x128xf32>
      %56 = arith.mulf %51, %55 : vector<8x128xf32>
      %57 = arith.addf %49, %56 : vector<8x128xf32>
      %cst_26 = arith.constant 0.000000e+00 : f32
      %58 = vector.broadcast %cst_26 : f32 to vector<8x128xf32>
      %59 = arith.cmpf oge, %57, %58 : vector<8x128xf32>
      %cst_27 = arith.constant 0.00999999977 : f32
      %60 = vector.broadcast %cst_27 : f32 to vector<8x128xf32>
      %61 = arith.mulf %60, %57 : vector<8x128xf32>
      %62 = arith.select %59, %57, %61 : vector<8x128xi1>, vector<8x128xf32>
      %c0_28 = arith.constant 0 : index
      %c0_29 = arith.constant 0 : index
      %63 = vector.load %arg7[%c0_28, %c0_29] : memref<1x8xf32, #tpu.memory_space<vmem>>, vector<1x8xf32>
      %cst_30 = arith.constant dense<0.000000e+00> : vector<1x128xf32>
      %64 = tpu.matmul %63, %62, %cst_30 {dimension_numbers = #tpu.dot_dimension_numbers<[1], [0], [0], [1], [0, 0, 1, 1], [], []>} : vector<1x8xf32>, vector<8x128xf32>, vector<1x128xf32> -> vector<1x128xf32>
      %c0_31 = arith.constant 0 : index
      %65 = arith.index_cast %1 : i32 to index
      %66 = vector.load %arg10[%c0_31, %65] : memref<1x128xf32, #tpu.memory_space<vmem>>, vector<1x128xf32>
      tpu.vector_store %arg10[%c0_31, %65], %64 {strides = array<i32>} : memref<1x128xf32, #tpu.memory_space<vmem>>, vector<1x128xf32>,
      %67 = tpu.iota {dimensions = array<i32: 1>} : vector<1x128xi32>
      %68 = vector.broadcast %1 : i32 to vector<1x128xi32>
      %69 = arith.addi %68, %67 : vector<1x128xi32>
      %c64_i32 = arith.constant 64 : i32
      %70 = vector.broadcast %c64_i32 : i32 to vector<1x128xi32>
      %71 = arith.cmpi slt, %69, %70 : vector<1x128xi32>
      %cst_32 = arith.constant 0.000000e+00 : f32
      %72 = vector.broadcast %cst_32 : f32 to vector<1x128xf32>
      %73 = arith.select %71, %64, %72 : vector<1x128xi1>, vector<1x128xf32>
      %c0_33 = arith.constant 0 : index
      %c0_34 = arith.constant 0 : index
      %74 = vector.load %arg11[%c0_33, %c0_34] : memref<1x1xf32, #tpu.memory_space<vmem>>, vector<1x1xf32>
      %cst_35 = arith.constant dense<0.000000e+00> : vector<1xf32>
      %75 = vector.multi_reduction <add>, %73, %cst_35 [1] : vector<1x128xf32> to vector<1xf32>
      %76 = vector.shape_cast %75 : vector<1xf32> to vector<1x1xf32>
      %77 = arith.addf %74, %76 : vector<1x1xf32>
      %c0_36 = arith.constant 0 : index
      %c0_37 = arith.constant 0 : index
      %78 = vector.load %arg11[%c0_36, %c0_37] : memref<1x1xf32, #tpu.memory_space<vmem>>, vector<1x1xf32>
      tpu.vector_store %arg11[%c0_36, %c0_37], %77 {strides = array<i32>} : memref<1x1xf32, #tpu.memory_space<vmem>>, vector<1x1xf32>,
      %c0_38 = arith.constant 0 : index
      %c0_39 = arith.constant 0 : index
      %79 = vector.load %arg12[%c0_38, %c0_39] : memref<1x1xf32, #tpu.memory_space<vmem>>, vector<1x1xf32>
      %80 = arith.mulf %73, %73 : vector<1x128xf32>
      %cst_40 = arith.constant dense<0.000000e+00> : vector<1xf32>
      %81 = vector.multi_reduction <add>, %80, %cst_40 [1] : vector<1x128xf32> to vector<1xf32>
      %82 = vector.shape_cast %81 : vector<1xf32> to vector<1x1xf32>
      %83 = arith.addf %79, %82 : vector<1x1xf32>
      %c0_41 = arith.constant 0 : index
      %c0_42 = arith.constant 0 : index
      %84 = vector.load %arg12[%c0_41, %c0_42] : memref<1x1xf32, #tpu.memory_space<vmem>>, vector<1x1xf32>
      tpu.vector_store %arg12[%c0_41, %c0_42], %83 {strides = array<i32>} : memref<1x1xf32, #tpu.memory_space<vmem>>, vector<1x1xf32>,
    } else {
    }
    %c1_i32 = arith.constant 1 : i32
    %10 = arith.cmpi eq, %arg1, %c1_i32 : i32
    %11 = arith.extui %10 : i1 to i32
    %c0_i32_4 = arith.constant 0 : i32
    %12 = arith.cmpi ne, %11, %c0_i32_4 : i32
    scf.if %12 {
      %c0 = arith.constant 0 : index
      %c0_5 = arith.constant 0 : index
      %13 = vector.load %arg11[%c0, %c0_5] : memref<1x1xf32, #tpu.memory_space<vmem>>, vector<1x1xf32>
      %cst = arith.constant 1.562500e-02 : f32
      %14 = vector.broadcast %cst : f32 to vector<1x1xf32>
      %15 = arith.mulf %13, %14 : vector<1x1xf32>
      %c0_6 = arith.constant 0 : index
      %c0_7 = arith.constant 0 : index
      %16 = vector.load %arg12[%c0_6, %c0_7] : memref<1x1xf32, #tpu.memory_space<vmem>>, vector<1x1xf32>
      %cst_8 = arith.constant 1.562500e-02 : f32
      %17 = vector.broadcast %cst_8 : f32 to vector<1x1xf32>
      %18 = arith.mulf %16, %17 : vector<1x1xf32>
      %19 = arith.mulf %15, %15 : vector<1x1xf32>
      %20 = arith.subf %18, %19 : vector<1x1xf32>
      %cst_9 = arith.constant 0.000000e+00 : f32
      %21 = vector.broadcast %cst_9 : f32 to vector<1x1xf32>
      %22 = arith.maximumf %20, %21 : vector<1x1xf32>
      %c0_10 = arith.constant 0 : index
      %23 = arith.index_cast %1 : i32 to index
      %24 = vector.load %arg10[%c0_10, %23] : memref<1x128xf32, #tpu.memory_space<vmem>>, vector<1x128xf32>
      %25 = vector.broadcast %15 : vector<1x1xf32> to vector<1x128xf32>
      %26 = arith.subf %24, %25 : vector<1x128xf32>
      %cst_11 = arith.constant 9.99999974E-6 : f32
      %27 = vector.broadcast %cst_11 : f32 to vector<1x1xf32>
      %28 = arith.addf %22, %27 : vector<1x1xf32>
      %29 = math.rsqrt %28 : vector<1x1xf32>
      %30 = vector.broadcast %29 : vector<1x1xf32> to vector<1x128xf32>
      %31 = arith.mulf %26, %30 : vector<1x128xf32>
      %32 = arith.negf %31 : vector<1x128xf32>
      %33 = math.exp %32 : vector<1x128xf32>
      %cst_12 = arith.constant 1.000000e+00 : f32
      %34 = vector.broadcast %cst_12 : f32 to vector<1x128xf32>
      %35 = arith.addf %34, %33 : vector<1x128xf32>
      %36 = arith.divf %34, %35 : vector<1x128xf32>
      %c0_13 = arith.constant 0 : index
      %c0_14 = arith.constant 0 : index
      %c0_15 = arith.constant 0 : index
      %37 = vector.load %arg4[%c0_13, %c0_14, %c0_15] : memref<1x4x128xf32, #tpu.memory_space<vmem>>, vector<1x4x128xf32>
      %38 = vector.shape_cast %37 : vector<1x4x128xf32> to vector<4x128xf32>
      %39 = vector.broadcast %36 : vector<1x128xf32> to vector<4x128xf32>
      %40 = arith.mulf %38, %39 : vector<4x128xf32>
      %c0_16 = arith.constant 0 : index
      %c0_17 = arith.constant 0 : index
      %c0_18 = arith.constant 0 : index
      %41 = vector.load %arg9[%c0_16, %c0_17, %c0_18] : memref<1x4x128xf32, #tpu.memory_space<vmem>>, vector<1x4x128xf32>
      %42 = vector.shape_cast %41 : vector<1x4x128xf32> to vector<4x128xf32>
      %43 = vector.shape_cast %40 : vector<4x128xf32> to vector<1x4x128xf32>
      tpu.vector_store %arg9[%c0_16, %c0_17, %c0_18], %43 {strides = array<i32>} : memref<1x4x128xf32, #tpu.memory_space<vmem>>, vector<1x4x128xf32>,
    } else {
    }
    return
  }
  func.func @transform_0(%arg0: i32, %arg1: i32, %arg2: i32) -> (i32, i32, i32) {
    %c1_i32 = arith.constant 1 : i32
    %0 = arith.subi %c1_i32, %arg1 : i32
    %1 = arith.muli %arg2, %0 : i32
    %c0_i32 = arith.constant 0 : i32
    %c0_i32_0 = arith.constant 0 : i32
    return %arg0, %c0_i32, %1 : i32, i32, i32
  }
  func.func @transform_1(%arg0: i32, %arg1: i32, %arg2: i32) -> (i32, i32, i32) {
    %c0_i32 = arith.constant 0 : i32
    %c0_i32_0 = arith.constant 0 : i32
    return %arg0, %c0_i32, %arg2 : i32, i32, i32
  }
  func.func @transform_2(%arg0: i32, %arg1: i32, %arg2: i32) -> (i32, i32) {
    %c0_i32 = arith.constant 0 : i32
    %c0_i32_0 = arith.constant 0 : i32
    %c0_i32_1 = arith.constant 0 : i32
    return %c0_i32, %c0_i32_0 : i32, i32
  }
  func.func @transform_3(%arg0: i32, %arg1: i32, %arg2: i32) -> (i32, i32) {
    %c0_i32 = arith.constant 0 : i32
    %c0_i32_0 = arith.constant 0 : i32
    %c0_i32_1 = arith.constant 0 : i32
    return %c0_i32, %c0_i32_0 : i32, i32
  }
  func.func @transform_4(%arg0: i32, %arg1: i32, %arg2: i32) -> (i32, i32) {
    %c0_i32 = arith.constant 0 : i32
    %c0_i32_0 = arith.constant 0 : i32
    %c0_i32_1 = arith.constant 0 : i32
    return %c0_i32, %c0_i32_0 : i32, i32
  }
  func.func @transform_5(%arg0: i32, %arg1: i32, %arg2: i32) -> (i32, i32, i32) {
    %c0_i32 = arith.constant 0 : i32
    %c0_i32_0 = arith.constant 0 : i32
    %c0_i32_1 = arith.constant 0 : i32
    return %arg0, %c0_i32, %c0_i32_0 : i32, i32, i32
  }
  func.func @transform_6(%arg0: i32, %arg1: i32, %arg2: i32) -> (i32, i32, i32) {
    %0 = arith.muli %arg2, %arg1 : i32
    %c0_i32 = arith.constant 0 : i32
    %c0_i32_0 = arith.constant 0 : i32
    return %arg0, %c0_i32, %0 : i32, i32, i32
  }
}

</mosaic_0001>

<llo_original>
// kernel: attention_block.2
$region0: #{attention_block.2}
  #allocation0 [shape = 'u32[]', space=smem, size = 0x4, offset = 0x4, fixed_abs, tag = 'smem constant byte address 0x4 - core index']
  #allocation1 [shape = 'u32[72,128]{1,0:T(1,128)}', space=vmem, size = 0x9000, scoped, tag = 'internal scratch']
  %s0 = inlined_call_operand.vmem [shape: f32[2,4,128], index: 0, kind: input, shape index: {}]
  %s1 = inlined_call_operand.vmem [shape: f32[2,4,128], index: 1, kind: input, shape index: {}]
  %s2 = inlined_call_operand.vmem [shape: f32[8,4], index: 2, kind: input, shape index: {}]
  %s3 = inlined_call_operand.vmem [shape: f32[8,4], index: 3, kind: input, shape index: {}]
  %s4 = inlined_call_operand.vmem [shape: f32[2,8,4], index: 4, kind: output, shape index: {}]
  %s5 = sld [smem:[#allocation0]]
  $region53: #{attention_block.2} parent=0
    _
  %s7 = ssub.s32 1, %s5
  %s8 = scalar_select 0, %s7, %s5
  loop: start=0, step=1, limit=4
  $region2: #{attention_block.2} parent=0 // loop_pre_header
    _
  $region3: #{attention_block.2} parent=0 // loop_header
    %s10 = sphi 0, %s14
    %p11 = scmp.ge.s32.totalorder %s10, 4
    %s17 = sphi 0, %s36
    %s18 = sphi 0, %s32
    %s19 = sphi 0, %s28
    %s20 = sphi 0, %s17
    %s21 = sphi 0, %s18
    %s22 = sphi 0, %s19
    %s23 = sphi 0, %s20
    %s24 = sphi 0, %s21
    %s25 = sphi 0, %s22
    %s43 = sphi 0, %s45
    %s46 = sphi 0, %s43
    %s47 = sphi 0, %s46
    %s63 = sphi 0, %s47
    %s73 = sphi 0, %s75
    %s76 = sphi 0, %s73
    %s77 = sphi 0, %s76
    %s93 = sphi 0, %s77
    %s97 = sphi 0, %s97
    %s99 = sphi 0, %s97
    %s100 = sphi 0, %s99
    %s114 = sphi 0, %s100
    %s118 = sphi 0, %s118
    %s120 = sphi 0, %s118
    %s121 = sphi 0, %s120
    %s135 = sphi 0, %s121
    %s143 = sphi 0, %s145
    %s146 = sphi 0, %s143
    %s147 = sphi 0, %s146
    %s163 = sphi 0, %s147
  $region4: #{attention_block.2} parent=0 // loop_header_branch
    %13 = sbr.rel (%p11) target = $region8
  $region5: #{attention_block.2} parent=0 // loop_body
    %s15 = ssub.s32 %s10, 1
    %s16 = ssub.s32 %s10, 2
    %s26 = sadd.s32 1, %s19
    %p27 = scmp.ge.s32.totalorder %s26, 1
    %s28 = scalar_select %p27, 0, %s26
    %s29 = sadd.s32 1, %s18
    %s30 = scalar_select %p27, %s29, %s18
    %p31 = scmp.ge.s32.totalorder %s30, 1
    %s32 = scalar_select %p31, 0, %s30
    %s33 = sadd.s32 1, %s17
    %s34 = scalar_select %p31, %s33, %s17
    %p35 = scmp.ge.s32.totalorder %s34, 2
    %s36 = scalar_select %p35, 0, %s34
    %s37 = sadd.s32 %s18, %s19
    %s38 = sadd.s32 %s32, %s28
    %s39 = ssub.s32 %s17, %s36
    %s40 = ssub.s32 %s37, %s38
    %s41 = sor.u32 %s39, %s40
    %p42 = scmp.eq.s32.totalorder %s41, 0
    %s44 = sadd.s32 %s43, 1
    %s45 = scalar_select %p42, %s43, %s44
    %p48 = pneg %p42
    %p49 = scmp.eq.s32.totalorder %s10, 1
    %p50 = por %p48, %p49
    %p51 = scmp.ne.s32.totalorder %s43, %s46
    %p52 = scmp.eq.s32.totalorder %s10, 0
    %p53 = por %p51, %p52
    %p54 = scmp.ne.s32.totalorder %s43, %s46
    %p55 = scmp.eq.s32.totalorder %s15, 1
    %p56 = por %p54, %p55
    %p57 = scmp.ne.s32.totalorder %s46, %s47
    %p58 = scmp.eq.s32.totalorder %s15, 0
    %p59 = por %p57, %p58
    %p60 = scmp.ne.s32.totalorder %s46, %s47
    %p61 = scmp.eq.s32.totalorder %s16, 1
    %p62 = por %p60, %p61
    %p64 = scmp.ne.s32.totalorder %s47, %s63
    %p65 = scmp.eq.s32.totalorder %s16, 0
    %p66 = por %p64, %p65
    %s67 = sadd.s32 %s18, %s19
    %s68 = sadd.s32 %s32, %s28
    %s69 = ssub.s32 %s17, %s36
    %s70 = ssub.s32 %s67, %s68
    %s71 = sor.u32 %s69, %s70
    %p72 = scmp.eq.s32.totalorder %s71, 0
    %s74 = sadd.s32 %s73, 1
    %s75 = scalar_select %p72, %s73, %s74
    %p78 = pneg %p72
    %p79 = scmp.eq.s32.totalorder %s10, 1
    %p80 = por %p78, %p79
    %p81 = scmp.ne.s32.totalorder %s73, %s76
    %p82 = scmp.eq.s32.totalorder %s10, 0
    %p83 = por %p81, %p82
    %p84 = scmp.ne.s32.totalorder %s73, %s76
    %p85 = scmp.eq.s32.totalorder %s15, 1
    %p86 = por %p84, %p85
    %p87 = scmp.ne.s32.totalorder %s76, %s77
    %p88 = scmp.eq.s32.totalorder %s15, 0
    %p89 = por %p87, %p88
    %p90 = scmp.ne.s32.totalorder %s76, %s77
    %p91 = scmp.eq.s32.totalorder %s16, 1
    %p92 = por %p90, %p91
    %p94 = scmp.ne.s32.totalorder %s77, %s93
    %p95 = scmp.eq.s32.totalorder %s16, 0
    %p96 = por %p94, %p95
    %s98 = sadd.s32 %s97, 1
    %p101 = scmp.eq.s32.totalorder %s10, 1
    %p102 = scmp.ne.s32.totalorder %s97, %s99
    %p103 = scmp.eq.s32.totalorder %s10, 0
    %p104 = por %p102, %p103
    %p105 = scmp.ne.s32.totalorder %s97, %s99
    %p106 = scmp.eq.s32.totalorder %s15, 1
    %p107 = por %p105, %p106
    %p108 = scmp.ne.s32.totalorder %s99, %s100
    %p109 = scmp.eq.s32.totalorder %s15, 0
    %p110 = por %p108, %p109
    %p111 = scmp.ne.s32.totalorder %s99, %s100
    %p112 = scmp.eq.s32.totalorder %s16, 1
    %p113 = por %p111, %p112
    %p115 = scmp.ne.s32.totalorder %s100, %s114
    %p116 = scmp.eq.s32.totalorder %s16, 0
    %p117 = por %p115, %p116
    %s119 = sadd.s32 %s118, 1
    %p122 = scmp.eq.s32.totalorder %s10, 1
    %p123 = scmp.ne.s32.totalorder %s118, %s120
    %p124 = scmp.eq.s32.totalorder %s10, 0
    %p125 = por %p123, %p124
    %p126 = scmp.ne.s32.totalorder %s118, %s120
    %p127 = scmp.eq.s32.totalorder %s15, 1
    %p128 = por %p126, %p127
    %p129 = scmp.ne.s32.totalorder %s120, %s121
    %p130 = scmp.eq.s32.totalorder %s15, 0
    %p131 = por %p129, %p130
    %p132 = scmp.ne.s32.totalorder %s120, %s121
    %p133 = scmp.eq.s32.totalorder %s16, 1
    %p134 = por %p132, %p133
    %p136 = scmp.ne.s32.totalorder %s121, %s135
    %p137 = scmp.eq.s32.totalorder %s16, 0
    %p138 = por %p136, %p137
    %s139 = sadd.s32 %s17, %s18
    %s140 = sadd.s32 %s36, %s32
    %s141 = ssub.s32 %s139, %s140
    %p142 = scmp.eq.s32.totalorder %s141, 0
    %s144 = sadd.s32 %s143, 1
    %s145 = scalar_select %p142, %s143, %s144
    %p148 = pneg %p142
    %p149 = scmp.eq.s32.totalorder %s10, 1
    %p150 = por %p148, %p149
    %p151 = scmp.ne.s32.totalorder %s143, %s146
    %p152 = scmp.eq.s32.totalorder %s10, 0
    %p153 = por %p151, %p152
    %p154 = scmp.ne.s32.totalorder %s143, %s146
    %p155 = scmp.eq.s32.totalorder %s15, 1
    %p156 = por %p154, %p155
    %p157 = scmp.ne.s32.totalorder %s146, %s147
    %p158 = scmp.eq.s32.totalorder %s15, 0
    %p159 = por %p157, %p158
    %p160 = scmp.ne.s32.totalorder %s146, %s147
    %p161 = scmp.eq.s32.totalorder %s16, 1
    %p162 = por %p160, %p161
    %p164 = scmp.ne.s32.totalorder %s147, %s163
    %p165 = scmp.eq.s32.totalorder %s16, 0
    %p166 = por %p164, %p165
    %p167 = scmp.le.s32.totalorder 1, %s10
    %p168 = scmp.lt.s32.totalorder %s10, 3
    %p169 = pnand %p167, %p168
    %p170 = pneg %p169
    // Predicated region
    $region9: #{attention_block.2} parent=5 // pred_check
      _
    $region10: #{attention_block.2} parent=5 // pred_check_branch
      %172 = sbr.rel (%p169) target = $region12
    $region11: #{attention_block.2} parent=5 // pred_region
      %s173 = ssub.s32 %s10, 1
      // Predicated region
      $region13: #{attention_block.2} parent=11 // pred_check
        %p174 = pneg %p110
      $region14: #{attention_block.2} parent=11 // pred_check_branch
        %176 = sbr.rel (%p174) target = $region16
      $region15: #{attention_block.2} parent=11 // pred_region
        _
      $region16: #{attention_block.2} parent=11 // pred_fallthru
        _
      // Predicated region
      $region17: #{attention_block.2} parent=11 // pred_check
        %p177 = pneg %p131
      $region18: #{attention_block.2} parent=11 // pred_check_branch
        %179 = sbr.rel (%p177) target = $region20
      $region19: #{attention_block.2} parent=11 // pred_region
        _
      $region20: #{attention_block.2} parent=11 // pred_fallthru
        _
    $region12: #{attention_block.2} parent=5 // pred_fallthru
      _
    %p180 = scmp.lt.s32.totalorder %s10, 2
    // Predicated region
    $region21: #{attention_block.2} parent=5 // pred_check
      %p181 = pneg %p180
    $region22: #{attention_block.2} parent=5 // pred_check_branch
      %183 = sbr.rel (%p181) target = $region24
    $region23: #{attention_block.2} parent=5 // pred_region
      // Predicated region
      $region25: #{attention_block.2} parent=23 // pred_check
        %p184 = pneg %p53
      $region26: #{attention_block.2} parent=23 // pred_check_branch
        %186 = sbr.rel (%p184) target = $region28
      $region27: #{attention_block.2} parent=23 // pred_region
        %s187 = sadd.s32 %s18, %s19
        %p188 = scmp.lt.s32.totalorder %s17, 1
        %s189 = scalar_select %p188, %s17, 1
        %p190 = scmp.lt.s32.totalorder %s187, 0
        %s191 = scalar_select %p190, %s187, 0
        %s192 = sadd.s32 %s191, %s189
        %s193 = smul.addr %s192, 4
        %s194 = scalar_lea.vmem %s0, %s193
        %s195 = sadd.s32 %s18, %s19
      $region28: #{attention_block.2} parent=23 // pred_fallthru
        _
      // Predicated region
      $region29: #{attention_block.2} parent=23 // pred_check
        %p196 = pneg %p83
      $region30: #{attention_block.2} parent=23 // pred_check_branch
        %198 = sbr.rel (%p196) target = $region32
      $region31: #{attention_block.2} parent=23 // pred_region
        %s199 = sadd.s32 %s18, %s19
        %p200 = scmp.lt.s32.totalorder %s17, 1
        %s201 = scalar_select %p200, %s17, 1
        %p202 = scmp.lt.s32.totalorder %s199, 0
        %s203 = scalar_select %p202, %s199, 0
        %s204 = sadd.s32 %s203, %s201
        %s205 = smul.addr %s204, 4
        %s206 = scalar_lea.vmem %s1, %s205
        %s207 = sadd.s32 %s18, %s19
      $region32: #{attention_block.2} parent=23 // pred_fallthru
        _
    $region24: #{attention_block.2} parent=5 // pred_fallthru
      _
    %p208 = scmp.le.s32.totalorder 1, %s10
    %p209 = scmp.lt.s32.totalorder %s10, 3
    %p210 = pnand %p208, %p209
    %p211 = pneg %p210
    // Predicated region
    $region33: #{attention_block.2} parent=5 // pred_check
      _
    $region34: #{attention_block.2} parent=5 // pred_check_branch
      %213 = sbr.rel (%p210) target = $region36
    $region35: #{attention_block.2} parent=5 // pred_region
      %s214 = ssub.s32 %s10, 1
      %s215 = sadd.s32 %s21, %s22
      %p216 = scmp.lt.s32.totalorder %s20, 1
      %s217 = scalar_select %p216, %s20, 1
      %p218 = scmp.lt.s32.totalorder %s215, 0
      %s219 = scalar_select %p218, %s215, 0
      %s220 = sadd.s32 %s219, %s217
      %s221 = smul.addr %s220, 4
      %s222 = scalar_lea.vmem %s0, %s221
      %p223 = pneg %p59
      %p224 = pneg %p56
      %s225 = sadd.s32 %s21, %s22
      %p226 = scmp.lt.s32.totalorder %s20, 1
      %s227 = scalar_select %p226, %s20, 1
      %p228 = scmp.lt.s32.totalorder %s225, 0
      %s229 = scalar_select %p228, %s225, 0
      %s230 = sadd.s32 %s229, %s227
      %s231 = smul.addr %s230, 4
      %s232 = scalar_lea.vmem %s1, %s231
      %p233 = pneg %p89
      %p234 = pneg %p86
      %p235 = pneg %p110
      %p236 = pneg %p107
      %p237 = pneg %p131
      %p238 = pneg %p128
      %p239 = pneg %p159
      %p240 = pneg %p156
      %s241 = sadd.s32 %s20, %s21
      %p242 = scmp.lt.s32.totalorder %s241, 1
      %s243 = scalar_select %p242, %s241, 1
      %s244 = smul.addr %s243, 8
      %s245 = scalar_lea.vmem %s4, %s244
      %s246 = sadd.s32 %s21, %s22
      %p247 = scmp.lt.s32.totalorder %s20, 1
      %s248 = scalar_select %p247, %s20, 1
      %p249 = scmp.lt.s32.totalorder %s246, 0
      %s250 = scalar_select %p249, %s246, 0
      %s251 = sadd.s32 %s250, %s248
      %s252 = smul.addr %s251, 4
      %s253 = scalar_lea.vmem %s0, %s252
      %s254 = sadd.s32 %s21, %s22
      %s255 = sadd.s32 %s21, %s22
      %p256 = scmp.lt.s32.totalorder %s20, 1
      %s257 = scalar_select %p256, %s20, 1
      %p258 = scmp.lt.s32.totalorder %s255, 0
      %s259 = scalar_select %p258, %s255, 0
      %s260 = sadd.s32 %s259, %s257
      %s261 = smul.addr %s260, 4
      %s262 = scalar_lea.vmem %s1, %s261
      %s263 = sadd.s32 %s21, %s22
      %s264 = sadd.s32 %s20, %s21
      %p265 = scmp.lt.s32.totalorder %s264, 1
      %s266 = scalar_select %p265, %s264, 1
      %s267 = smul.addr %s266, 8
      %s268 = scalar_lea.vmem %s4, %s267
      %s269 = sadd.s32 %s20, %s21
      %p270 = scmp.eq.s32.totalorder %s22, 0
      // Predicated region
      $region37: #{attention_block.2} parent=35 // pred_check
        %p271 = pneg %p270
      $region38: #{attention_block.2} parent=35 // pred_check_branch
        %273 = sbr.rel (%p271) target = $region40
      $region39: #{attention_block.2} parent=35 // pred_region
        %vm274 = vcmask 31744
        %275 = vst.msk [vmem:[%s268] sm:$0xff] %vm274, 0.0
      $region40: #{attention_block.2} parent=35 // pred_fallthru
        _
      %v276 = vld [vmem:[%s2] sm:$0xff]
      %v277 = vld [vmem:[%s253] sm:$0xf]
      %vm278 = vcmask 31744
      %v280 = vsel %vm278, %v276, 0
      %vm282 = vcmask 1043456
      %v284 = vsel %vm282, %v277, 0
      %286 = vmatpush.msra.mxu0 0.0
      %287 = vmatpush.msra.mxu0 0.0
      %288 = vmatpush.msra.mxu0 0.0
      %289 = vmatpush.msra.mxu0 0.0
      %290 = vmatpush.msra.mxu0 0.0
      %291 = vmatpush.msra.mxu0 0.0
      %292 = vmatpush.msra.mxu0 0.0
      %293 = vmatpush.msra.mxu0 0.0
      %294 = vmatpush.msra.mxu0 0.0
      %295 = vmatpush.msra.mxu0 0.0
      %296 = vmatpush.msra.mxu0 0.0
      %297 = vmatpush.msra.mxu0 0.0
      %298 = vmatpush.msra.mxu0 0.0
      %299 = vmatpush.msra.mxu0 0.0
      %300 = vmatpush.msra.mxu0 0.0
      %301 = vmatpush.msra.mxu0 %v284
      %302 = vmatmul.f32.gmra.mxu0 %v280
      %v303 = vpop.f32.mrf.mxu0
      %v304 = vadd.f32 0.0, %v303
      %305 = vdwg.mxu0
      %v306 = vld [vmem:[%s3] sm:$0xff]
      %v307 = vld [vmem:[%s262] sm:$0xf]
      %v309 = vsel %vm278, %v306, 0
      %v312 = vsel %vm282, %v307, 0
      %314 = vmatpush.msra.mxu0 0.0
      %315 = vmatpush.msra.mxu0 0.0
      %316 = vmatpush.msra.mxu0 0.0
      %317 = vmatpush.msra.mxu0 0.0
      %318 = vmatpush.msra.mxu0 0.0
      %319 = vmatpush.msra.mxu0 0.0
      %320 = vmatpush.msra.mxu0 0.0
      %321 = vmatpush.msra.mxu0 0.0
      %322 = vmatpush.msra.mxu0 0.0
      %323 = vmatpush.msra.mxu0 0.0
      %324 = vmatpush.msra.mxu0 0.0
      %325 = vmatpush.msra.mxu0 0.0
      %326 = vmatpush.msra.mxu0 0.0
      %327 = vmatpush.msra.mxu0 0.0
      %328 = vmatpush.msra.mxu0 0.0
      %329 = vmatpush.msra.mxu0 %v312
      %330 = vmatmul.f32.gmra.mxu0 %v309
      %v331 = vpop.f32.mrf.mxu0
      %v332 = vadd.f32 0.0, %v331
      %333 = vdwg.mxu0
      %v334 = vld [vmem:[%s268] sm:$0xff]
      %335 = vadd.xlane.f32.xlu0 %v304
      %v336 = vpop.xlane.xlu0 %335
      %v337 = vmul.f32 %v304, %v304
      %338 = vadd.xlane.f32.xlu0 %v337
      %v339 = vpop.xlane.xlu0 %338
      %340 = vadd.xlane.f32.xlu0 %v332
      %v341 = vpop.xlane.xlu0 %340
      %v342 = vmul.f32 %v332, %v332
      %343 = vadd.xlane.f32.xlu0 %v342
      %v344 = vpop.xlane.xlu0 %343
      %vm345 = vcmask 7168
      %v346 = vsel %vm345, %v336, %v339
      %vm347 = vcmask 15360
      %v348 = vsel %vm347, %v346, %v341
      %vm349 = vcmask 23552
      %v350 = vsel %vm349, %v348, %v344
      %v351 = vadd.f32 %v334, %v350
      %352 = vst.msk [vmem:[%s268] sm:$0xff] %vm278, %v351
      %s353 = sadd.s32 %s20, %s21
      %p354 = scmp.lt.s32.totalorder %s353, 1
      %s355 = scalar_select %p354, %s353, 1
      %s356 = smul.addr %s355, 8
      %s357 = scalar_lea.vmem %s4, %s356
      // Predicated region
      $region41: #{attention_block.2} parent=35 // pred_check
        %p358 = pneg %p156
      $region42: #{attention_block.2} parent=35 // pred_check_branch
        %360 = sbr.rel (%p358) target = $region44
      $region43: #{attention_block.2} parent=35 // pred_region
        %s361 = sadd.s32 %s20, %s21
      $region44: #{attention_block.2} parent=35 // pred_fallthru
        _
    $region36: #{attention_block.2} parent=5 // pred_fallthru
      _
    %p362 = scmp.le.s32.totalorder 2, %s10
    // Predicated region
    $region45: #{attention_block.2} parent=5 // pred_check
      %p363 = pneg %p362
    $region46: #{attention_block.2} parent=5 // pred_check_branch
      %365 = sbr.rel (%p363) target = $region48
    $region47: #{attention_block.2} parent=5 // pred_region
      %s366 = ssub.s32 %s10, 2
      // Predicated region
      $region49: #{attention_block.2} parent=47 // pred_check
        %p367 = pneg %p162
      $region50: #{attention_block.2} parent=47 // pred_check_branch
        %369 = sbr.rel (%p367) target = $region52
      $region51: #{attention_block.2} parent=47 // pred_region
        %s370 = sadd.s32 %s23, %s24
        %p371 = scmp.lt.s32.totalorder %s370, 1
        %s372 = scalar_select %p371, %s370, 1
        %s373 = smul.addr %s372, 8
        %s374 = scalar_lea.vmem %s4, %s373
      $region52: #{attention_block.2} parent=47 // pred_fallthru
        _
    $region48: #{attention_block.2} parent=5 // pred_fallthru
      _
  $region6: #{attention_block.2} parent=0 // loop_footer
    %s14 = sadd.s32 1, %s10
  $region7: #{attention_block.2} parent=0 // loop_footer_branch
    %9 = sbr.rel target = $region3
  $region8: #{attention_block.2} parent=0 // loop_exit
    _

// kernel: attention_block.3
$region0: #{attention_block.3}
  #allocation0 [shape = 'u32[]', space=smem, size = 0x4, offset = 0x4, fixed_abs, tag = 'smem constant byte address 0x4 - core index']
  #allocation1 [shape = 'u32[72,128]{1,0:T(1,128)}', space=vmem, size = 0x9000, scoped, tag = 'internal scratch']
  #allocation2 [shape = 'f32[1,128]{1,0:T(1,128)}', space=vmem, size = 0x200, scoped, tag = 'scratch operand']
  #allocation3 [shape = 'f32[1,1]{1,0:T(1,128)}', space=vmem, size = 0x200, scoped, tag = 'scratch operand']
  #allocation4 [shape = 'f32[1,1]{1,0:T(1,128)}', space=vmem, size = 0x200, scoped, tag = 'scratch operand']
  %s0 = inlined_call_operand.vmem [shape: f32[2,4,128], index: 0, kind: input, shape index: {}]
  %s1 = inlined_call_operand.vmem [shape: f32[2,4,128], index: 1, kind: input, shape index: {}]
  %s2 = inlined_call_operand.vmem [shape: f32[8,4], index: 2, kind: input, shape index: {}]
  %s3 = inlined_call_operand.vmem [shape: f32[8,4], index: 3, kind: input, shape index: {}]
  %s4 = inlined_call_operand.vmem [shape: f32[1,8], index: 4, kind: input, shape index: {}]
  %s5 = inlined_call_operand.vmem [shape: f32[2,8,4], index: 5, kind: input, shape index: {}]
  %s6 = inlined_call_operand.vmem [shape: f32[2,4,128], index: 6, kind: output, shape index: {}]
  %s7 = sld [smem:[#allocation0]]
  $region69: #{attention_block.3} parent=0
    _
  %s9 = ssub.s32 1, %s7
  %s10 = scalar_select 0, %s9, %s7
  loop: start=0, step=1, limit=6
  $region2: #{attention_block.3} parent=0 // loop_pre_header
    _
  $region3: #{attention_block.3} parent=0 // loop_header
    %s12 = sphi 0, %s16
    %p13 = scmp.ge.s32.totalorder %s12, 6
    %s19 = sphi 0, %s38
    %s20 = sphi 0, %s34
    %s21 = sphi 0, %s30
    %s22 = sphi 0, %s19
    %s23 = sphi 0, %s20
    %s24 = sphi 0, %s21
    %s25 = sphi 0, %s22
    %s26 = sphi 0, %s23
    %s27 = sphi 0, %s24
    %s47 = sphi 0, %s49
    %s50 = sphi 0, %s47
    %s51 = sphi 0, %s50
    %s67 = sphi 0, %s51
    %s75 = sphi 0, %s77
    %s78 = sphi 0, %s75
    %s79 = sphi 0, %s78
    %s95 = sphi 0, %s79
    %s99 = sphi 0, %s99
    %s101 = sphi 0, %s99
    %s102 = sphi 0, %s101
    %s116 = sphi 0, %s102
    %s120 = sphi 0, %s120
    %s122 = sphi 0, %s120
    %s123 = sphi 0, %s122
    %s137 = sphi 0, %s123
    %s141 = sphi 0, %s141
    %s143 = sphi 0, %s141
    %s144 = sphi 0, %s143
    %s158 = sphi 0, %s144
    %s164 = sphi 0, %s166
    %s167 = sphi 0, %s164
    %s168 = sphi 0, %s167
    %s184 = sphi 0, %s168
    %s194 = sphi 0, %s196
    %s197 = sphi 0, %s194
    %s198 = sphi 0, %s197
    %s214 = sphi 0, %s198
  $region4: #{attention_block.3} parent=0 // loop_header_branch
    %15 = sbr.rel (%p13) target = $region8
  $region5: #{attention_block.3} parent=0 // loop_body
    %s17 = ssub.s32 %s12, 1
    %s18 = ssub.s32 %s12, 2
    %s28 = sadd.s32 1, %s21
    %p29 = scmp.ge.s32.totalorder %s28, 1
    %s30 = scalar_select %p29, 0, %s28
    %s31 = sadd.s32 1, %s20
    %s32 = scalar_select %p29, %s31, %s20
    %p33 = scmp.ge.s32.totalorder %s32, 2
    %s34 = scalar_select %p33, 0, %s32
    %s35 = sadd.s32 1, %s19
    %s36 = scalar_select %p33, %s35, %s19
    %p37 = scmp.ge.s32.totalorder %s36, 2
    %s38 = scalar_select %p37, 0, %s36
    %s39 = ssub.s32 1, %s20
    %s40 = smul.u32 %s21, %s39
    %s41 = ssub.s32 1, %s34
    %s42 = smul.u32 %s30, %s41
    %s43 = ssub.s32 %s19, %s38
    %s44 = ssub.s32 %s40, %s42
    %s45 = sor.u32 %s43, %s44
    %p46 = scmp.eq.s32.totalorder %s45, 0
    %s48 = sadd.s32 %s47, 1
    %s49 = scalar_select %p46, %s47, %s48
    %p52 = pneg %p46
    %p53 = scmp.eq.s32.totalorder %s12, 3
    %p54 = por %p52, %p53
    %p55 = scmp.ne.s32.totalorder %s47, %s50
    %p56 = scmp.eq.s32.totalorder %s12, 0
    %p57 = por %p55, %p56
    %p58 = scmp.ne.s32.totalorder %s47, %s50
    %p59 = scmp.eq.s32.totalorder %s17, 3
    %p60 = por %p58, %p59
    %p61 = scmp.ne.s32.totalorder %s50, %s51
    %p62 = scmp.eq.s32.totalorder %s17, 0
    %p63 = por %p61, %p62
    %p64 = scmp.ne.s32.totalorder %s50, %s51
    %p65 = scmp.eq.s32.totalorder %s18, 3
    %p66 = por %p64, %p65
    %p68 = scmp.ne.s32.totalorder %s51, %s67
    %p69 = scmp.eq.s32.totalorder %s18, 0
    %p70 = por %p68, %p69
    %s71 = ssub.s32 %s19, %s38
    %s72 = ssub.s32 %s21, %s30
    %s73 = sor.u32 %s71, %s72
    %p74 = scmp.eq.s32.totalorder %s73, 0
    %s76 = sadd.s32 %s75, 1
    %s77 = scalar_select %p74, %s75, %s76
    %p80 = pneg %p74
    %p81 = scmp.eq.s32.totalorder %s12, 3
    %p82 = por %p80, %p81
    %p83 = scmp.ne.s32.totalorder %s75, %s78
    %p84 = scmp.eq.s32.totalorder %s12, 0
    %p85 = por %p83, %p84
    %p86 = scmp.ne.s32.totalorder %s75, %s78
    %p87 = scmp.eq.s32.totalorder %s17, 3
    %p88 = por %p86, %p87
    %p89 = scmp.ne.s32.totalorder %s78, %s79
    %p90 = scmp.eq.s32.totalorder %s17, 0
    %p91 = por %p89, %p90
    %p92 = scmp.ne.s32.totalorder %s78, %s79
    %p93 = scmp.eq.s32.totalorder %s18, 3
    %p94 = por %p92, %p93
    %p96 = scmp.ne.s32.totalorder %s79, %s95
    %p97 = scmp.eq.s32.totalorder %s18, 0
    %p98 = por %p96, %p97
    %s100 = sadd.s32 %s99, 1
    %p103 = scmp.eq.s32.totalorder %s12, 3
    %p104 = scmp.ne.s32.totalorder %s99, %s101
    %p105 = scmp.eq.s32.totalorder %s12, 0
    %p106 = por %p104, %p105
    %p107 = scmp.ne.s32.totalorder %s99, %s101
    %p108 = scmp.eq.s32.totalorder %s17, 3
    %p109 = por %p107, %p108
    %p110 = scmp.ne.s32.totalorder %s101, %s102
    %p111 = scmp.eq.s32.totalorder %s17, 0
    %p112 = por %p110, %p111
    %p113 = scmp.ne.s32.totalorder %s101, %s102
    %p114 = scmp.eq.s32.totalorder %s18, 3
    %p115 = por %p113, %p114
    %p117 = scmp.ne.s32.totalorder %s102, %s116
    %p118 = scmp.eq.s32.totalorder %s18, 0
    %p119 = por %p117, %p118
    %s121 = sadd.s32 %s120, 1
    %p124 = scmp.eq.s32.totalorder %s12, 3
    %p125 = scmp.ne.s32.totalorder %s120, %s122
    %p126 = scmp.eq.s32.totalorder %s12, 0
    %p127 = por %p125, %p126
    %p128 = scmp.ne.s32.totalorder %s120, %s122
    %p129 = scmp.eq.s32.totalorder %s17, 3
    %p130 = por %p128, %p129
    %p131 = scmp.ne.s32.totalorder %s122, %s123
    %p132 = scmp.eq.s32.totalorder %s17, 0
    %p133 = por %p131, %p132
    %p134 = scmp.ne.s32.totalorder %s122, %s123
    %p135 = scmp.eq.s32.totalorder %s18, 3
    %p136 = por %p134, %p135
    %p138 = scmp.ne.s32.totalorder %s123, %s137
    %p139 = scmp.eq.s32.totalorder %s18, 0
    %p140 = por %p138, %p139
    %s142 = sadd.s32 %s141, 1
    %p145 = scmp.eq.s32.totalorder %s12, 3
    %p146 = scmp.ne.s32.totalorder %s141, %s143
    %p147 = scmp.eq.s32.totalorder %s12, 0
    %p148 = por %p146, %p147
    %p149 = scmp.ne.s32.totalorder %s141, %s143
    %p150 = scmp.eq.s32.totalorder %s17, 3
    %p151 = por %p149, %p150
    %p152 = scmp.ne.s32.totalorder %s143, %s144
    %p153 = scmp.eq.s32.totalorder %s17, 0
    %p154 = por %p152, %p153
    %p155 = scmp.ne.s32.totalorder %s143, %s144
    %p156 = scmp.eq.s32.totalorder %s18, 3
    %p157 = por %p155, %p156
    %p159 = scmp.ne.s32.totalorder %s144, %s158
    %p160 = scmp.eq.s32.totalorder %s18, 0
    %p161 = por %p159, %p160
    %s162 = ssub.s32 %s19, %s38
    %p163 = scmp.eq.s32.totalorder %s162, 0
    %s165 = sadd.s32 %s164, 1
    %s166 = scalar_select %p163, %s164, %s165
    %p169 = pneg %p163
    %p170 = scmp.eq.s32.totalorder %s12, 3
    %p171 = por %p169, %p170
    %p172 = scmp.ne.s32.totalorder %s164, %s167
    %p173 = scmp.eq.s32.totalorder %s12, 0
    %p174 = por %p172, %p173
    %p175 = scmp.ne.s32.totalorder %s164, %s167
    %p176 = scmp.eq.s32.totalorder %s17, 3
    %p177 = por %p175, %p176
    %p178 = scmp.ne.s32.totalorder %s167, %s168
    %p179 = scmp.eq.s32.totalorder %s17, 0
    %p180 = por %p178, %p179
    %p181 = scmp.ne.s32.totalorder %s167, %s168
    %p182 = scmp.eq.s32.totalorder %s18, 3
    %p183 = por %p181, %p182
    %p185 = scmp.ne.s32.totalorder %s168, %s184
    %p186 = scmp.eq.s32.totalorder %s18, 0
    %p187 = por %p185, %p186
    %s188 = smul.u32 %s21, %s20
    %s189 = smul.u32 %s30, %s34
    %s190 = ssub.s32 %s19, %s38
    %s191 = ssub.s32 %s188, %s189
    %s192 = sor.u32 %s190, %s191
    %p193 = scmp.eq.s32.totalorder %s192, 0
    %s195 = sadd.s32 %s194, 1
    %s196 = scalar_select %p193, %s194, %s195
    %p199 = pneg %p193
    %p200 = scmp.eq.s32.totalorder %s12, 3
    %p201 = por %p199, %p200
    %p202 = scmp.ne.s32.totalorder %s194, %s197
    %p203 = scmp.eq.s32.totalorder %s12, 0
    %p204 = por %p202, %p203
    %p205 = scmp.ne.s32.totalorder %s194, %s197
    %p206 = scmp.eq.s32.totalorder %s17, 3
    %p207 = por %p205, %p206
    %p208 = scmp.ne.s32.totalorder %s197, %s198
    %p209 = scmp.eq.s32.totalorder %s17, 0
    %p210 = por %p208, %p209
    %p211 = scmp.ne.s32.totalorder %s197, %s198
    %p212 = scmp.eq.s32.totalorder %s18, 3
    %p213 = por %p211, %p212
    %p215 = scmp.ne.s32.totalorder %s198, %s214
    %p216 = scmp.eq.s32.totalorder %s18, 0
    %p217 = por %p215, %p216
    %p218 = scmp.le.s32.totalorder 1, %s12
    %p219 = scmp.lt.s32.totalorder %s12, 5
    %p220 = pnand %p218, %p219
    %p221 = pneg %p220
    // Predicated region
    $region9: #{attention_block.3} parent=5 // pred_check
      _
    $region10: #{attention_block.3} parent=5 // pred_check_branch
      %223 = sbr.rel (%p220) target = $region12
    $region11: #{attention_block.3} parent=5 // pred_region
      %s224 = ssub.s32 %s12, 1
      // Predicated region
      $region13: #{attention_block.3} parent=11 // pred_check
        %p225 = pneg %p112
      $region14: #{attention_block.3} parent=11 // pred_check_branch
        %227 = sbr.rel (%p225) target = $region16
      $region15: #{attention_block.3} parent=11 // pred_region
        _
      $region16: #{attention_block.3} parent=11 // pred_fallthru
        _
      // Predicated region
      $region17: #{attention_block.3} parent=11 // pred_check
        %p228 = pneg %p133
      $region18: #{attention_block.3} parent=11 // pred_check_branch
        %230 = sbr.rel (%p228) target = $region20
      $region19: #{attention_block.3} parent=11 // pred_region
        _
      $region20: #{attention_block.3} parent=11 // pred_fallthru
        _
      // Predicated region
      $region21: #{attention_block.3} parent=11 // pred_check
        %p231 = pneg %p154
      $region22: #{attention_block.3} parent=11 // pred_check_branch
        %233 = sbr.rel (%p231) target = $region24
      $region23: #{attention_block.3} parent=11 // pred_region
        _
      $region24: #{attention_block.3} parent=11 // pred_fallthru
        _
    $region12: #{attention_block.3} parent=5 // pred_fallthru
      _
    %p234 = scmp.lt.s32.totalorder %s12, 4
    // Predicated region
    $region25: #{attention_block.3} parent=5 // pred_check
      %p235 = pneg %p234
    $region26: #{attention_block.3} parent=5 // pred_check_branch
      %237 = sbr.rel (%p235) target = $region28
    $region27: #{attention_block.3} parent=5 // pred_region
      // Predicated region
      $region29: #{attention_block.3} parent=27 // pred_check
        %p238 = pneg %p57
      $region30: #{attention_block.3} parent=27 // pred_check_branch
        %240 = sbr.rel (%p238) target = $region32
      $region31: #{attention_block.3} parent=27 // pred_region
        %s241 = ssub.s32 1, %s20
        %s242 = smul.u32 %s21, %s241
        %p243 = scmp.lt.s32.totalorder %s19, 1
        %s244 = scalar_select %p243, %s19, 1
        %p245 = scmp.lt.s32.totalorder %s242, 0
        %s246 = scalar_select %p245, %s242, 0
        %s247 = sadd.s32 %s246, %s244
        %s248 = smul.addr %s247, 4
        %s249 = scalar_lea.vmem %s0, %s248
        %s250 = ssub.s32 1, %s20
        %s251 = smul.u32 %s21, %s250
      $region32: #{attention_block.3} parent=27 // pred_fallthru
        _
      // Predicated region
      $region33: #{attention_block.3} parent=27 // pred_check
        %p252 = pneg %p85
      $region34: #{attention_block.3} parent=27 // pred_check_branch
        %254 = sbr.rel (%p252) target = $region36
      $region35: #{attention_block.3} parent=27 // pred_region
        %p255 = scmp.lt.s32.totalorder %s19, 1
        %s256 = scalar_select %p255, %s19, 1
        %p257 = scmp.lt.s32.totalorder %s21, 0
        %s258 = scalar_select %p257, %s21, 0
        %s259 = sadd.s32 %s258, %s256
        %s260 = smul.addr %s259, 4
        %s261 = scalar_lea.vmem %s1, %s260
      $region36: #{attention_block.3} parent=27 // pred_fallthru
        _
      // Predicated region
      $region37: #{attention_block.3} parent=27 // pred_check
        %p262 = pneg %p174
      $region38: #{attention_block.3} parent=27 // pred_check_branch
        %264 = sbr.rel (%p262) target = $region40
      $region39: #{attention_block.3} parent=27 // pred_region
        %p265 = scmp.lt.s32.totalorder %s19, 1
        %s266 = scalar_select %p265, %s19, 1
        %s267 = smul.addr %s266, 8
        %s268 = scalar_lea.vmem %s5, %s267
      $region40: #{attention_block.3} parent=27 // pred_fallthru
        _
    $region28: #{attention_block.3} parent=5 // pred_fallthru
      _
    %p269 = scmp.le.s32.totalorder 1, %s12
    %p270 = scmp.lt.s32.totalorder %s12, 5
    %p271 = pnand %p269, %p270
    %p272 = pneg %p271
    // Predicated region
    $region41: #{attention_block.3} parent=5 // pred_check
      _
    $region42: #{attention_block.3} parent=5 // pred_check_branch
      %274 = sbr.rel (%p271) target = $region44
    $region43: #{attention_block.3} parent=5 // pred_region
      %s275 = ssub.s32 %s12, 1
      %s276 = ssub.s32 1, %s23
      %s277 = smul.u32 %s24, %s276
      %p278 = scmp.lt.s32.totalorder %s22, 1
      %s279 = scalar_select %p278, %s22, 1
      %p280 = scmp.lt.s32.totalorder %s277, 0
      %s281 = scalar_select %p280, %s277, 0
      %s282 = sadd.s32 %s281, %s279
      %s283 = smul.addr %s282, 4
      %s284 = scalar_lea.vmem %s0, %s283
      %p285 = pneg %p63
      %p286 = pneg %p60
      %p287 = scmp.lt.s32.totalorder %s22, 1
      %s288 = scalar_select %p287, %s22, 1
      %p289 = scmp.lt.s32.totalorder %s24, 0
      %s290 = scalar_select %p289, %s24, 0
      %s291 = sadd.s32 %s290, %s288
      %s292 = smul.addr %s291, 4
      %s293 = scalar_lea.vmem %s1, %s292
      %p294 = pneg %p91
      %p295 = pneg %p88
      %p296 = pneg %p112
      %p297 = pneg %p109
      %p298 = pneg %p133
      %p299 = pneg %p130
      %p300 = pneg %p154
      %p301 = pneg %p151
      %p302 = scmp.lt.s32.totalorder %s22, 1
      %s303 = scalar_select %p302, %s22, 1
      %s304 = smul.addr %s303, 8
      %s305 = scalar_lea.vmem %s5, %s304
      %p306 = pneg %p180
      %p307 = pneg %p177
      %p308 = pneg %p210
      %p309 = pneg %p207
      %s310 = smul.u32 %s24, %s23
      %p311 = scmp.lt.s32.totalorder %s22, 1
      %s312 = scalar_select %p311, %s22, 1
      %p313 = scmp.lt.s32.totalorder %s310, 0
      %s314 = scalar_select %p313, %s310, 0
      %s315 = sadd.s32 %s314, %s312
      %s316 = smul.addr %s315, 4
      %s317 = scalar_lea.vmem %s6, %s316
      %s318 = ssub.s32 1, %s23
      %s319 = smul.u32 %s24, %s318
      %p320 = scmp.lt.s32.totalorder %s22, 1
      %s321 = scalar_select %p320, %s22, 1
      %p322 = scmp.lt.s32.totalorder %s319, 0
      %s323 = scalar_select %p322, %s319, 0
      %s324 = sadd.s32 %s323, %s321
      %s325 = smul.addr %s324, 4
      %s326 = scalar_lea.vmem %s0, %s325
      %s327 = ssub.s32 1, %s23
      %s328 = smul.u32 %s24, %s327
      %p329 = scmp.lt.s32.totalorder %s22, 1
      %s330 = scalar_select %p329, %s22, 1
      %p331 = scmp.lt.s32.totalorder %s24, 0
      %s332 = scalar_select %p331, %s24, 0
      %s333 = sadd.s32 %s332, %s330
      %s334 = smul.addr %s333, 4
      %s335 = scalar_lea.vmem %s1, %s334
      %p336 = scmp.lt.s32.totalorder %s22, 1
      %s337 = scalar_select %p336, %s22, 1
      %s338 = smul.addr %s337, 8
      %s339 = scalar_lea.vmem %s5, %s338
      %s340 = smul.u32 %s24, %s23
      %p341 = scmp.lt.s32.totalorder %s22, 1
      %s342 = scalar_select %p341, %s22, 1
      %p343 = scmp.lt.s32.totalorder %s340, 0
      %s344 = scalar_select %p343, %s340, 0
      %s345 = sadd.s32 %s344, %s342
      %s346 = smul.addr %s345, 4
      %s347 = scalar_lea.vmem %s6, %s346
      %s348 = smul.u32 %s24, %s23
      %s349 = smul.u32 %s24, 128
      %p350 = scmp.eq.s32.totalorder %s23, 0
      %p351 = scmp.eq.s32.totalorder %s24, 0
      %p352 = pnand %p350, %p351
      %p353 = pneg %p352
      // Predicated region
      $region45: #{attention_block.3} parent=43 // pred_check
        _
      $region46: #{attention_block.3} parent=43 // pred_check_branch
        %355 = sbr.rel (%p352) target = $region48
      $region47: #{attention_block.3} parent=43 // pred_region
        %vm356 = vcmask 0
        %357 = vst.msk [vmem:[#allocation3] sm:$0x1] %vm356, 0.0
        %358 = vst.msk [vmem:[#allocation4] sm:$0x1] %vm356, 0.0
      $region48: #{attention_block.3} parent=43 // pred_fallthru
        _
      // Predicated region
      $region49: #{attention_block.3} parent=43 // pred_check
        %p359 = pneg %p350
      $region50: #{attention_block.3} parent=43 // pred_check_branch
        %361 = sbr.rel (%p359) target = $region52
      $region51: #{attention_block.3} parent=43 // pred_region
        %v362 = vld [vmem:[%s2] sm:$0xff]
        %v363 = vld [vmem:[%s326] sm:$0xf]
        %vm364 = vcmask 31744
        %v366 = vsel %vm364, %v362, 0
        %vm368 = vcmask 1043456
        %v370 = vsel %vm368, %v363, 0
        %372 = vmatpush.msra.mxu0 0.0
        %373 = vmatpush.msra.mxu0 0.0
        %374 = vmatpush.msra.mxu0 0.0
        %375 = vmatpush.msra.mxu0 0.0
        %376 = vmatpush.msra.mxu0 0.0
        %377 = vmatpush.msra.mxu0 0.0
        %378 = vmatpush.msra.mxu0 0.0
        %379 = vmatpush.msra.mxu0 0.0
        %380 = vmatpush.msra.mxu0 0.0
        %381 = vmatpush.msra.mxu0 0.0
        %382 = vmatpush.msra.mxu0 0.0
        %383 = vmatpush.msra.mxu0 0.0
        %384 = vmatpush.msra.mxu0 0.0
        %385 = vmatpush.msra.mxu0 0.0
        %386 = vmatpush.msra.mxu0 0.0
        %387 = vmatpush.msra.mxu0 %v370
        %388 = vmatmul.f32.gmra.mxu0 %v366
        %v389 = vpop.f32.mrf.mxu0
        %v390 = vadd.f32 0.0, %v389
        %391 = vdwg.mxu0
        %v392 = vld [vmem:[%s3] sm:$0xff]
        %v393 = vld [vmem:[%s335] sm:$0xf]
        %v395 = vsel %vm364, %v392, 0
        %v398 = vsel %vm368, %v393, 0
        %400 = vmatpush.msra.mxu0 0.0
        %401 = vmatpush.msra.mxu0 0.0
        %402 = vmatpush.msra.mxu0 0.0
        %403 = vmatpush.msra.mxu0 0.0
        %404 = vmatpush.msra.mxu0 0.0
        %405 = vmatpush.msra.mxu0 0.0
        %406 = vmatpush.msra.mxu0 0.0
        %407 = vmatpush.msra.mxu0 0.0
        %408 = vmatpush.msra.mxu0 0.0
        %409 = vmatpush.msra.mxu0 0.0
        %410 = vmatpush.msra.mxu0 0.0
        %411 = vmatpush.msra.mxu0 0.0
        %412 = vmatpush.msra.mxu0 0.0
        %413 = vmatpush.msra.mxu0 0.0
        %414 = vmatpush.msra.mxu0 0.0
        %415 = vmatpush.msra.mxu0 %v398
        %416 = vmatmul.f32.gmra.mxu0 %v395
        %v417 = vpop.f32.mrf.mxu0
        %v418 = vadd.f32 0.0, %v417
        %419 = vdwg.mxu0
        %v420 = vld [vmem:[%s339] sm:$0xff]
        %v421 = vmul.f32 %v420, 0.015625
        %v422 = vmul.f32 %v421, %v421
        %424 = vrot.lane.b32.xlu0 %v422, 1
        %v425 = vpop.permute.xlu0 %424
        %v427 = vsub.f32 %v421, %v425
        %v428 = vmax.f32 %v427, 0.0
        %430 = vset.pattern.permute.xlu0 0
        %431 = vperm.xlu0 %430, %v421
        %v432 = vpop.permute.xlu0 %431
        %v434 = vsub.f32 %v390, %v432
        %v435 = vadd.f32 %v428, 1e-05
        %v436 = vrsqrt.pop %v435
        %v437 = vmul.f32 %v436, %v435
        %v438 = vmul.f32 %v437, %v436
        %v439 = vmul.f32 0.5, %v438
        %v440 = vsub.f32 1.5, %v439
        %v441 = vmul.f32 %v436, %v440
        %vm442 = vweird.f32 %v435
        %vm443 = vweird.f32 %v436
        %vm444 = vmor %vm442, %vm443
        %v445 = vsel %vm444, %v436, %v441
        %447 = vset.pattern.permute.xlu0 1
        %448 = vperm.xlu0 %447, %v445
        %v449 = vpop.permute.xlu0 %448
        %v451 = vmul.f32 %v434, %v449
        %452 = vset.pattern.permute.xlu0 2
        %453 = vperm.xlu0 %452, %v421
        %v454 = vpop.permute.xlu0 %453
        %v456 = vsub.f32 %v418, %v454
        %457 = vset.pattern.permute.xlu0 3
        %458 = vperm.xlu0 %457, %v445
        %v459 = vpop.permute.xlu0 %458
        %v461 = vmul.f32 %v456, %v459
        %v462 = vadd.f32 %v451, %v461
        %vm463 = vcmp.ge.f32.partialorder %v462, 0.0
        %v464 = vmul.f32 %v462, 0.01
        %v465 = vsel %vm463, %v462, %v464
        %v466 = vld [vmem:[%s4] sm:$0x1]
        %vm467 = vcmask 64512
        %v469 = vsel %vm467, %v466, 0
        %471 = vmatpush.msra.mxu0 0.0
        %472 = vmatpush.msra.mxu0 0.0
        %473 = vmatpush.msra.mxu0 0.0
        %474 = vmatpush.msra.mxu0 0.0
        %475 = vmatpush.msra.mxu0 0.0
        %476 = vmatpush.msra.mxu0 0.0
        %477 = vmatpush.msra.mxu0 0.0
        %478 = vmatpush.msra.mxu0 0.0
        %479 = vmatpush.msra.mxu0 0.0
        %480 = vmatpush.msra.mxu0 0.0
        %481 = vmatpush.msra.mxu0 0.0
        %482 = vmatpush.msra.mxu0 0.0
        %483 = vmatpush.msra.mxu0 0.0
        %484 = vmatpush.msra.mxu0 0.0
        %485 = vmatpush.msra.mxu0 0.0
        %486 = vmatpush.msra.mxu0 %v465
        %487 = vmatmul.f32.gmra.mxu0 %v469
        %v488 = vpop.f32.mrf.mxu0
        %v489 = vadd.f32 0.0, %v488
        %490 = vdwg.mxu0
        %s491 = sshra.s32 %s349, 7
        %s492 = sand.u32 %s349, 127
        %s493 = scalar_lea.vmem [#allocation2], %s491
        %494 = vst [vmem:[%s493] sm:$0x1] %v489
        %v495 = vlaneseq
        %v496 = vand.u32 %v495, 127
        %v497 = vstv %s349
        %v498 = vadd.s32 %v497, %v496
        %vm499 = vcmp.lt.s32.totalorder %v498, 64
        %v500 = vsel %vm499, %v489, 0.0
        %v501 = vld [vmem:[#allocation3] sm:$0x1]
        %vm502 = vcmask 1040384
        %v503 = vsel %vm502, %v500, 0.0
        %504 = vadd.xlane.f32.xlu0 %v503
        %v505 = vpop.xlane.xlu0 %504
        %v506 = vadd.f32 %v501, %v505
        %vm507 = vcmask 0
        %508 = vst.msk [vmem:[#allocation3] sm:$0x1] %vm507, %v506
        %v509 = vld [vmem:[#allocation4] sm:$0x1]
        %v510 = vmul.f32 %v500, %v500
        %v511 = vsel %vm502, %v510, 0.0
        %512 = vadd.xlane.f32.xlu0 %v511
        %v513 = vpop.xlane.xlu0 %512
        %v514 = vadd.f32 %v509, %v513
        %515 = vst.msk [vmem:[#allocation4] sm:$0x1] %vm507, %v514
      $region52: #{attention_block.3} parent=43 // pred_fallthru
        _
      %p516 = scmp.eq.s32.totalorder %s23, 1
      // Predicated region
      $region53: #{attention_block.3} parent=43 // pred_check
        %p517 = pneg %p516
      $region54: #{attention_block.3} parent=43 // pred_check_branch
        %519 = sbr.rel (%p517) target = $region56
      $region55: #{attention_block.3} parent=43 // pred_region
        %v520 = vld [vmem:[#allocation3] sm:$0x1]
        %v521 = vmul.f32 %v520, 0.015625
        %v522 = vld [vmem:[#allocation4] sm:$0x1]
        %v523 = vmul.f32 %v522, 0.015625
        %v524 = vmul.f32 %v521, %v521
        %v525 = vsub.f32 %v523, %v524
        %v526 = vmax.f32 %v525, 0.0
        %s527 = sshra.s32 %s349, 7
        %s528 = sand.u32 %s349, 127
        %s529 = scalar_lea.vmem [#allocation2], %s527
        %v530 = vld [vmem:[%s529] sm:$0x1]
        %532 = vset.pattern.permute.xlu0 0
        %533 = vperm.xlu0 %532, %v521
        %v534 = vpop.permute.xlu0 %533
        %v536 = vperm.slane %v534, 0
        %v537 = vsub.f32 %v530, %v536
        %v538 = vadd.f32 %v526, 1e-05
        %v539 = vrsqrt.pop %v538
        %v540 = vmul.f32 %v539, %v538
        %v541 = vmul.f32 %v540, %v539
        %v542 = vmul.f32 0.5, %v541
        %v543 = vsub.f32 1.5, %v542
        %v544 = vmul.f32 %v539, %v543
        %vm545 = vweird.f32 %v538
        %vm546 = vweird.f32 %v539
        %vm547 = vmor %vm545, %vm546
        %v548 = vsel %vm547, %v539, %v544
        %550 = vset.pattern.permute.xlu0 0
        %551 = vperm.xlu0 %550, %v548
        %v552 = vpop.permute.xlu0 %551
        %v554 = vperm.slane %v552, 0
        %v555 = vmul.f32 %v537, %v554
        %v556 = vxor.u32 %v555, 2147483648
        %v557 = vmul.f32 %v556, 1.442695
        %v558 = vpow.pop %v557
        %v559 = vadd.f32 %v558, 1.0
        %v560 = vrcp.pop %v559
        %v561 = vmul.f32 %v559, %v560
        %v562 = vsub.f32 1.0, %v561
        %v563 = vmul.f32 %v560, %v562
        %v564 = vadd.f32 %v560, %v563
        %vm565 = vweird.f32 %v559
        %vm566 = vweird.f32 %v560
        %vm567 = vmor %vm565, %vm566
        %v568 = vsel %vm567, %v560, %v564
        %v569 = vand.u32 2147483647, %v559
        %vm570 = vcmp.eq.f32.partialorder %v569, 8.507059e+37
        %v571 = vand.u32 %v559, 2147483648
        %v572 = vor.u32 1.1754944e-38, %v571
        %v573 = vsel %vm570, %v572, %v568
        %v574 = vmul.f32 1.0, %v573
        %v575 = vld [vmem:[%s335] sm:$0xf]
        %v577 = vperm.slane %v574, 0
        %v579 = vmul.f32 %v575, %v577
        %580 = vst [vmem:[%s347] sm:$0xf] %v579
      $region56: #{attention_block.3} parent=43 // pred_fallthru
        _
      %s581 = smul.u32 %s24, %s23
      %p582 = scmp.lt.s32.totalorder %s22, 1
      %s583 = scalar_select %p582, %s22, 1
      %p584 = scmp.lt.s32.totalorder %s581, 0
      %s585 = scalar_select %p584, %s581, 0
      %s586 = sadd.s32 %s585, %s583
      %s587 = smul.addr %s586, 4
      %s588 = scalar_lea.vmem %s6, %s587
      // Predicated region
      $region57: #{attention_block.3} parent=43 // pred_check
        %p589 = pneg %p207
      $region58: #{attention_block.3} parent=43 // pred_check_branch
        %591 = sbr.rel (%p589) target = $region60
      $region59: #{attention_block.3} parent=43 // pred_region
        %s592 = smul.u32 %s24, %s23
      $region60: #{attention_block.3} parent=43 // pred_fallthru
        _
    $region44: #{attention_block.3} parent=5 // pred_fallthru
      _
    %p593 = scmp.le.s32.totalorder 2, %s12
    // Predicated region
    $region61: #{attention_block.3} parent=5 // pred_check
      %p594 = pneg %p593
    $region62: #{attention_block.3} parent=5 // pred_check_branch
      %596 = sbr.rel (%p594) target = $region64
    $region63: #{attention_block.3} parent=5 // pred_region
      %s597 = ssub.s32 %s12, 2
      // Predicated region
      $region65: #{attention_block.3} parent=63 // pred_check
        %p598 = pneg %p213
      $region66: #{attention_block.3} parent=63 // pred_check_branch
        %600 = sbr.rel (%p598) target = $region68
      $region67: #{attention_block.3} parent=63 // pred_region
        %s601 = smul.u32 %s27, %s26
        %p602 = scmp.lt.s32.totalorder %s25, 1
        %s603 = scalar_select %p602, %s25, 1
        %p604 = scmp.lt.s32.totalorder %s601, 0
        %s605 = scalar_select %p604, %s601, 0
        %s606 = sadd.s32 %s605, %s603
        %s607 = smul.addr %s606, 4
        %s608 = scalar_lea.vmem %s6, %s607
      $region68: #{attention_block.3} parent=63 // pred_fallthru
        _
    $region64: #{attention_block.3} parent=5 // pred_fallthru
      _
  $region6: #{attention_block.3} parent=0 // loop_footer
    %s16 = sadd.s32 1, %s12
  $region7: #{attention_block.3} parent=0 // loop_footer_branch
    %11 = sbr.rel target = $region3
  $region8: #{attention_block.3} parent=0 // loop_exit
    _

</llo_original>
